<compile_context>
chip_gen: v7x
topology: tpu7x:2x2x1
jax: 0.10.0
libtpu: 0.0.40
codegen_flags: <defaults>
</compile_context>

<pallas_src>
import functools
import math

import jax
import jax.numpy as jnp
from jax import lax
from jax.experimental import pallas as pl
from jax.experimental.pallas import tpu as pltpu


def _round_up(n, m):
    return ((n + m - 1) // m) * m


def _vmem_cap_bytes():
    """Physical VMEM per core (falls back to the smallest, v7x's 64 MiB)."""
    try:
        return int(pltpu.get_tpu_info().vmem_capacity_bytes)
    except Exception:
        return 64 << 20


def _vmem_limit(needed):
    cap = _vmem_cap_bytes()
    return int(max(16 << 20, min(int(needed), cap - (4 << 20))))


# ---------------------------------------------------------------------------
# Sublayer 0: pre-LayerNorm multi-head self-attention + residual.
# Grid: (B, n_query_tiles). At qi==0 the full-sequence LayerNorm + fused QKV
# projection is computed once per batch element and cached in VMEM scratch;
# every query tile then does per-head (tq, S) attention, writes into a head
# concat buffer, and applies Wo + residual as one full-width matmul.
# ---------------------------------------------------------------------------
def _attn_sublayer_kernel(x_ref, bias_ref, g_ref, bta_ref,
                          wqkv_ref, bqkv_ref, wo_ref, bo_ref,
                          o_ref, qkv_ref, heads_ref, *, num_heads, eps):
    cd = wqkv_ref.dtype                                   # MXU compute dtype
    d_model = x_ref.shape[-1]
    d_k = d_model // num_heads
    tq = o_ref.shape[1]
    qi = pl.program_id(1)

    # --- per-batch prologue: LayerNorm + fused (lane-dense) QKV projection ---
    @pl.when(qi == 0)
    def _():
        x = x_ref[0].astype(jnp.float32)                  # (S, d_model)
        # torch-style LayerNorm: unbiased std, eps added to std.
        mean = jnp.mean(x, axis=-1, keepdims=True)
        var = jnp.sum((x - mean) ** 2, axis=-1, keepdims=True) / (d_model - 1)
        nx = g_ref[...] * (x - mean) / (jnp.sqrt(var) + eps) + bta_ref[...]
        # 1/sqrt(d_k) is already folded into Wq / bq in the wrapper.
        qkv = jnp.dot(nx.astype(cd), wqkv_ref[...],
                      preferred_element_type=jnp.float32) + bqkv_ref[...]
        qkv_ref[...] = qkv.astype(cd)

    q_off = pl.multiple_of(qi * tq, tq)
    bias = bias_ref[0]                                    # (1, S) additive mask

    # Static per-head slice offsets keep every slice start a compile-time
    # constant; the only cross-iteration state is the heads_ref scratch write,
    # so live ranges stay bounded even though the loop is unrolled.
    for h in range(num_heads):
        hs = h * d_k
        q_h = qkv_ref[pl.ds(q_off, tq), hs:hs + d_k]                      # (tq, d_k)
        k_h = qkv_ref[:, d_model + hs:d_model + hs + d_k]                 # (S,  d_k)
        v_h = qkv_ref[:, 2 * d_model + hs:2 * d_model + hs + d_k]         # (S,  d_k)
        # QK^T without an explicit transpose: contract the d_k axes directly.
        s = lax.dot_general(q_h, k_h, (((1,), (1,)), ((), ())),
                            preferred_element_type=jnp.float32)           # (tq, S)
        s = s + bias                                                      # masked_fill(mask==0,-1e9)
        m = jnp.max(s, axis=-1, keepdims=True)
        p = jnp.exp(s - m)
        denom = jnp.sum(p, axis=-1, keepdims=True)
        # dropout(p) in eval mode == identity
        o = jnp.dot(p.astype(cd), v_h, preferred_element_type=jnp.float32)  # (tq, d_k)
        o = o * pl.reciprocal(denom, approx=False)        # deferred softmax normalization
        heads_ref[:, hs:hs + d_k] = o.astype(heads_ref.dtype)

    # Single full-width output projection + residual (dropout = identity).
    y = jnp.dot(heads_ref[...], wo_ref[...],
                preferred_element_type=jnp.float32) + bo_ref[...]
    x_tile = x_ref[0, pl.ds(q_off, tq), :].astype(jnp.float32)
    o_ref[0] = (y + x_tile).astype(o_ref.dtype)


def attention_sublayer(x, mask, gamma, beta, wq, bq, wk, bk, wv, bv, wo, bo,
                       *, num_heads, eps=1e-6, compute_dtype=jnp.bfloat16,
                       tq=256):
    B, S, d_model = x.shape
    assert d_model % num_heads == 0
    d_k = d_model // num_heads
    cd = jnp.dtype(compute_dtype)
    scale = 1.0 / math.sqrt(d_k)

    # Query tiling: bounds the per-step f32 score matrix at (tq, S).
    if S <= tq:
        tq_, s_pad = S, S
    else:
        tq_ = _round_up(min(tq, S), 8)
        s_pad = _round_up(S, tq_)
    n_q = s_pad // tq_

    xp = x
    mask3 = mask.reshape(B, 1, S)
    bias = jnp.where(mask3 == 0, -1e9, 0.0).astype(jnp.float32)   # additive mask
    if s_pad != S:
        xp = jnp.pad(x, ((0, 0), (0, s_pad - S), (0, 0)))
        bias = jnp.pad(bias, ((0, 0), (0, 0), (0, s_pad - S)),
                       constant_values=-1e9)                      # padded keys masked

    # Fuse Q/K/V into one weight; fold the 1/sqrt(d_k) scale into Wq/bq.
    wqkv = jnp.concatenate([wq * scale, wk, wv], axis=1).astype(cd)
    bqkv = jnp.concatenate([bq * scale, bk, bv], axis=0
                           ).reshape(1, 3 * d_model).astype(jnp.float32)
    wo_ = wo.astype(cd)
    bo_ = bo.reshape(1, d_model).astype(jnp.float32)
    g2 = gamma.reshape(1, d_model).astype(jnp.float32)
    bt2 = beta.reshape(1, d_model).astype(jnp.float32)

    xb = x.dtype.itemsize
    cdb = cd.itemsize
    blk = (s_pad * d_model * xb + s_pad * 4 + 2 * d_model * 4
           + 3 * d_model * d_model * cdb + 3 * d_model * 4
           + d_model * d_model * cdb + d_model * 4
           + tq_ * d_model * xb)
    scratch_b = s_pad * 3 * d_model * cdb + tq_ * d_model * cdb
    temps = (3 * tq_ * s_pad * 4                   # score / exp temporaries (f32)
             + 4 * s_pad * 3 * d_model * 4)        # prologue LN / qkv temporaries
    vmem_limit = _vmem_limit(2 * blk + scratch_b + temps + (2 << 20))

    kernel = functools.partial(_attn_sublayer_kernel, num_heads=num_heads, eps=eps)
    out = pl.pallas_call(
        kernel,
        out_shape=jax.ShapeDtypeStruct((B, s_pad, d_model), x.dtype),
        grid_spec=pltpu.PrefetchScalarGridSpec(
            num_scalar_prefetch=0,
            grid=(B, n_q),
            in_specs=[
                pl.BlockSpec((1, s_pad, d_model), lambda b, q: (b, 0, 0)),   # x (full seq)
                pl.BlockSpec((1, 1, s_pad), lambda b, q: (b, 0, 0)),         # mask bias
                pl.BlockSpec((1, d_model), lambda b, q: (0, 0)),             # LN gamma
                pl.BlockSpec((1, d_model), lambda b, q: (0, 0)),             # LN beta
                pl.BlockSpec((d_model, 3 * d_model), lambda b, q: (0, 0)),   # fused Wqkv
                pl.BlockSpec((1, 3 * d_model), lambda b, q: (0, 0)),         # fused bqkv
                pl.BlockSpec((d_model, d_model), lambda b, q: (0, 0)),       # Wo
                pl.BlockSpec((1, d_model), lambda b, q: (0, 0)),             # bo
            ],
            out_specs=pl.BlockSpec((1, tq_, d_model), lambda b, q: (b, q, 0)),
            scratch_shapes=[
                pltpu.VMEM((s_pad, 3 * d_model), cd),     # cached LN(x) @ Wqkv
                pltpu.VMEM((tq_, d_model), cd),           # per-tile head concat
            ],
        ),
        compiler_params=pltpu.CompilerParams(
            dimension_semantics=("parallel", "arbitrary"),
            vmem_limit_bytes=vmem_limit),
    )(xp, bias, g2, bt2, wqkv, bqkv, wo_, bo_)
    if s_pad != S:
        out = out[:, :S, :]
    return out


# ---------------------------------------------------------------------------
# Sublayer 1: pre-LayerNorm position-wise FFN + residual.
# Grid: (token tiles, d_ff chunks). The LayerNorm-ed tile is cached in VMEM
# scratch at k==0; the second matmul accumulates into an f32 VMEM accumulator.
# ---------------------------------------------------------------------------
def _ffn_sublayer_kernel(x_ref, g_ref, bta_ref, w1_ref, b1_ref, w2_ref, b2_ref,
                         o_ref, nx_ref, acc_ref, *, eps):
    k = pl.program_id(1)

    @pl.when(k == 0)
    def _():
        x = x_ref[...].astype(jnp.float32)
        d_model = x.shape[-1]
        mean = jnp.mean(x, axis=-1, keepdims=True)
        var = jnp.sum((x - mean) ** 2, axis=-1, keepdims=True) / (d_model - 1)
        nx = g_ref[...] * (x - mean) / (jnp.sqrt(var) + eps) + bta_ref[...]
        nx_ref[...] = nx.astype(nx_ref.dtype)
        acc_ref[...] = jnp.zeros_like(acc_ref)

    h = jnp.dot(nx_ref[...], w1_ref[...], preferred_element_type=jnp.float32)
    h = jnp.maximum(h + b1_ref[...], 0.0)                 # bias + ReLU in f32
    # dropout(h) in eval mode == identity
    acc_ref[...] += jnp.dot(h.astype(w2_ref.dtype), w2_ref[...],
                            preferred_element_type=jnp.float32)

    @pl.when(k == pl.num_programs(1) - 1)
    def _():
        y = acc_ref[...] + b2_ref[...] + x_ref[...].astype(jnp.float32)   # residual
        o_ref[...] = y.astype(o_ref.dtype)


def ffn_sublayer(x, gamma, beta, w1, b1, w2, b2, *, eps=1e-6,
                 compute_dtype=jnp.bfloat16, tm=None, tff=None):
    B, S, d_model = x.shape
    d_ff = w1.shape[1]
    M = B * S
    cd = jnp.dtype(compute_dtype)

    # Generation-aware tile defaults: big tiles on 128 MiB parts (v5e / v6e),
    # conservative on v7x's 64 MiB.
    big_vmem = _vmem_cap_bytes() >= (96 << 20)
    if tm is None:
        tm = 512 if big_vmem else 256
    if tff is None:
        tff = 1024 if big_vmem else 512

    # Token tile: clamped to the (8-aligned) token count.
    tm = _round_up(max(8, min(_round_up(tm, 8), _round_up(M, 8))), 8)
    m_pad = _round_up(M, tm)

    # d_ff chunk: full d_ff if small, else a 128-multiple chunk (pad d_ff).
    if d_ff <= tff:
        tff = d_ff
    else:
        tff = _round_up(min(tff, d_ff), 128)
    d_ff_pad = _round_up(d_ff, tff)

    x2 = x.reshape(M, d_model)
    if m_pad != M:
        x2 = jnp.pad(x2, ((0, m_pad - M), (0, 0)))        # zero rows are harmless

    w1p = w1.astype(cd)
    w2p = w2.astype(cd)
    b1p = b1.reshape(1, d_ff).astype(jnp.float32)
    if d_ff_pad != d_ff:
        w1p = jnp.pad(w1p, ((0, 0), (0, d_ff_pad - d_ff)))
        b1p = jnp.pad(b1p, ((0, 0), (0, d_ff_pad - d_ff)))
        w2p = jnp.pad(w2p, ((0, d_ff_pad - d_ff), (0, 0)))
    g2 = gamma.reshape(1, d_model).astype(jnp.float32)
    bt2 = beta.reshape(1, d_model).astype(jnp.float32)
    b2p = b2.reshape(1, d_model).astype(jnp.float32)

    xb = x.dtype.itemsize
    blk = (tm * d_model * xb + 3 * d_model * 4
           + d_model * tff * cd.itemsize + tff * 4
           + tff * d_model * cd.itemsize
           + tm * d_model * xb)
    scratch = tm * d_model * (cd.itemsize + 4)
    temps = 2 * tm * tff * 4                              # (tm, tff) f32 intermediate
    vmem_limit = _vmem_limit(4 * blk + 2 * scratch + temps + (2 << 20))

    kernel = functools.partial(_ffn_sublayer_kernel, eps=eps)
    out = pl.pallas_call(
        kernel,
        out_shape=jax.ShapeDtypeStruct((m_pad, d_model), x.dtype),
        grid_spec=pltpu.PrefetchScalarGridSpec(
            num_scalar_prefetch=0,
            grid=(m_pad // tm, d_ff_pad // tff),
            in_specs=[
                pl.BlockSpec((tm, d_model), lambda i, k: (i, 0)),     # x tile
                pl.BlockSpec((1, d_model), lambda i, k: (0, 0)),      # LN gamma
                pl.BlockSpec((1, d_model), lambda i, k: (0, 0)),      # LN beta
                pl.BlockSpec((d_model, tff), lambda i, k: (0, k)),    # W1 chunk
                pl.BlockSpec((1, tff), lambda i, k: (0, k)),          # b1 chunk
                pl.BlockSpec((tff, d_model), lambda i, k: (k, 0)),    # W2 chunk
                pl.BlockSpec((1, d_model), lambda i, k: (0, 0)),      # b2
            ],
            out_specs=pl.BlockSpec((tm, d_model), lambda i, k: (i, 0)),
            scratch_shapes=[
                pltpu.VMEM((tm, d_model), cd),            # cached LayerNorm(x)
                pltpu.VMEM((tm, d_model), jnp.float32),   # f32 accumulator
            ],
        ),
        compiler_params=pltpu.CompilerParams(
            dimension_semantics=("parallel", "arbitrary"),
            vmem_limit_bytes=vmem_limit),
    )(x2, g2, bt2, w1p, b1p, w2p, b2p)
    return out[:M].reshape(B, S, d_model)


# ---------------------------------------------------------------------------
# Full EncoderLayer forward.
# ---------------------------------------------------------------------------
def encoder_layer_forward(x, mask, params, *, num_heads, eps=1e-6,
                          compute_dtype=jnp.bfloat16, tq=256, tm=None, tff=None):
    x = attention_sublayer(
        x, mask, params["ln0_a"], params["ln0_b"],
        params["wq"], params["bq"], params["wk"], params["bk"],
        params["wv"], params["bv"], params["wo"], params["bo"],
        num_heads=num_heads, eps=eps, compute_dtype=compute_dtype, tq=tq)
    x = ffn_sublayer(
        x, params["ln1_a"], params["ln1_b"],
        params["w1"], params["b1"], params["w2"], params["b2"],
        eps=eps, compute_dtype=compute_dtype, tm=tm, tff=tff)
    return x


# ---------------------------------------------------------------------------
# Pure-JAX reference mirroring the PyTorch module (f32).
# ---------------------------------------------------------------------------
def _layer_norm_ref(x, a, b, eps):
    mean = x.mean(-1, keepdims=True)
    var = jnp.sum((x - mean) ** 2, -1, keepdims=True) / (x.shape[-1] - 1)
    return a * (x - mean) / (jnp.sqrt(var) + eps) + b


def _mha_ref(x, mask3, wq, bq, wk, bk, wv, bv, wo, bo, num_heads):
    B, S, d_model = x.shape
    d_k = d_model // num_heads

    def split(t):
        return t.reshape(B, S, num_heads, d_k).transpose(0, 2, 1, 3)

    q, k, v = split(x @ wq + bq), split(x @ wk + bk), split(x @ wv + bv)
    scores = jnp.einsum("bhqd,bhkd->bhqk", q, k) / math.sqrt(d_k)
    scores = jnp.where(mask3[:, None, :, :] == 0, -1e9, scores)
    p = jax.nn.softmax(scores, axis=-1)
    o = jnp.einsum("bhqk,bhkd->bhqd", p, v)
    o = o.transpose(0, 2, 1, 3).reshape(B, S, d_model)
    return o @ wo + bo


def encoder_layer_reference(x, mask, p, *, num_heads, eps=1e-6):
    B, S, _ = x.shape
    mask3 = mask.reshape(B, 1, S).astype(jnp.float32)
    nx = _layer_norm_ref(x, p["ln0_a"], p["ln0_b"], eps)
    x = x + _mha_ref(nx, mask3, p["wq"], p["bq"], p["wk"], p["bk"],
                     p["wv"], p["bv"], p["wo"], p["bo"], num_heads)
    nx = _layer_norm_ref(x, p["ln1_a"], p["ln1_b"], eps)
    x = x + (jnp.maximum(nx @ p["w1"] + p["b1"], 0.0) @ p["w2"] + p["b2"])
    return x


if __name__ == "__main__":
    # Small shapes consistent with the module: batch=2, seq=8, d_model=32,
    # heads=4, d_ff=64.
    B, S, d_model, num_heads, d_ff = 2, 8, 32, 4, 64

    keys = jax.random.split(jax.random.PRNGKey(0), 14)

    def _uniform(key, shape, fan_in):
        lim = 1.0 / (fan_in ** 0.5)
        return jax.random.uniform(key, shape, jnp.float32, -lim, lim)

    params = dict(
        ln0_a=jnp.ones((d_model,), jnp.float32),
        ln0_b=jnp.zeros((d_model,), jnp.float32),
        ln1_a=jnp.ones((d_model,), jnp.float32),
        ln1_b=jnp.zeros((d_model,), jnp.float32),
        wq=_uniform(keys[0], (d_model, d_model), d_model),
        bq=_uniform(keys[1], (d_model,), d_model),
        wk=_uniform(keys[2], (d_model, d_model), d_model),
        bk=_uniform(keys[3], (d_model,), d_model),
        wv=_uniform(keys[4], (d_model, d_model), d_model),
        bv=_uniform(keys[5], (d_model,), d_model),
        wo=_uniform(keys[6], (d_model, d_model), d_model),
        bo=_uniform(keys[7], (d_model,), d_model),
        w1=_uniform(keys[8], (d_model, d_ff), d_model),
        b1=_uniform(keys[9], (d_ff,), d_model),
        w2=_uniform(keys[10], (d_ff, d_model), d_ff),
        b2=_uniform(keys[11], (d_model,), d_ff),
    )
    x = jax.random.normal(keys[12], (B, S, d_model), jnp.float32)
    # Key-position mask (src_mask convention): 1 = keep, 0 = masked.
    mask = jnp.ones((B, 1, S), jnp.float32).at[1, 0, 6:].set(0.0)

    ref = encoder_layer_reference(x, mask, params, num_heads=num_heads)

    # f32 compute path: tight correctness check against the PyTorch-equivalent ref.
    run_f32 = jax.jit(functools.partial(encoder_layer_forward,
                                        num_heads=num_heads,
                                        compute_dtype=jnp.float32))
    out32 = run_f32(x, mask, params)
    jax.block_until_ready(out32)
    assert out32.shape == (B, S, d_model)
    assert jnp.allclose(out32, ref, atol=1e-4, rtol=1e-4), "f32 mismatch vs reference"

    # bf16 compute path (f32 accumulation): loose sanity check.
    run_bf16 = jax.jit(functools.partial(encoder_layer_forward,
                                         num_heads=num_heads,
                                         compute_dtype=jnp.bfloat16))
    out_bf16 = run_bf16(x, mask, params)
    jax.block_until_ready(out_bf16)
    assert bool(jnp.all(jnp.isfinite(out_bf16)))
    assert float(jnp.max(jnp.abs(out_bf16 - ref))) < 0.25, "bf16 mismatch vs reference"

    print("KERNEL_OK")
</pallas_src>

<mosaic_0001>
module attributes {stable_mosaic.version = 11 : i64} {
  func.func @_ffn_sublayer_kernel(%arg0: i32, %arg1: i32, %arg2: memref<16x32xf32, #tpu.memory_space<vmem>>, %arg3: memref<1x32xf32, #tpu.memory_space<vmem>>, %arg4: memref<1x32xf32, #tpu.memory_space<vmem>>, %arg5: memref<32x64xf32, #tpu.memory_space<vmem>>, %arg6: memref<1x64xf32, #tpu.memory_space<vmem>>, %arg7: memref<64x32xf32, #tpu.memory_space<vmem>>, %arg8: memref<1x32xf32, #tpu.memory_space<vmem>>, %arg9: memref<16x32xf32, #tpu.memory_space<vmem>>, %arg10: memref<16x32xf32, #tpu.memory_space<vmem>>, %arg11: memref<16x32xf32, #tpu.memory_space<vmem>>) attributes {dimension_semantics = [#tpu.dimension_semantics<parallel>, #tpu.dimension_semantics<arbitrary>], iteration_bounds = array<i64: 1, 1>, scalar_prefetch = 0 : i64, scratch_operands = 2 : i64, tpu.core_type = #tpu.core_type<tc>, window_params = [{transform_indices = @transform_0, window_bounds = array<i64: 16, 32>}, {pipeline_mode = #tpu.pipeline_mode<synchronous>, transform_indices = @transform_1, window_bounds = array<i64: 1, 32>}, {pipeline_mode = #tpu.pipeline_mode<synchronous>, transform_indices = @transform_2, window_bounds = array<i64: 1, 32>}, {transform_indices = @transform_3, window_bounds = array<i64: 32, 64>}, {transform_indices = @transform_4, window_bounds = array<i64: 1, 64>}, {transform_indices = @transform_5, window_bounds = array<i64: 64, 32>}, {pipeline_mode = #tpu.pipeline_mode<synchronous>, transform_indices = @transform_6, window_bounds = array<i64: 1, 32>}, {transform_indices = @transform_7, window_bounds = array<i64: 16, 32>}]} {
    %c0_i32 = arith.constant 0 : i32
    %0 = arith.cmpi eq, %arg1, %c0_i32 : i32
    %1 = arith.extui %0 : i1 to i32
    %c0_i32_0 = arith.constant 0 : i32
    %2 = arith.cmpi ne, %1, %c0_i32_0 : i32
    scf.if %2 {
      %c0_16 = arith.constant 0 : index
      %c0_17 = arith.constant 0 : index
      %19 = vector.load %arg2[%c0_16, %c0_17] : memref<16x32xf32, #tpu.memory_space<vmem>>, vector<16x32xf32>
      %cst_18 = arith.constant dense<0.000000e+00> : vector<16xf32>
      %20 = vector.multi_reduction <add>, %19, %cst_18 [1] : vector<16x32xf32> to vector<16xf32>
      %21 = vector.shape_cast %20 : vector<16xf32> to vector<16x1xf32>
      %cst_19 = arith.constant 3.200000e+01 : f32
      %22 = vector.broadcast %cst_19 : f32 to vector<16x1xf32>
      %23 = arith.divf %21, %22 : vector<16x1xf32>
      %24 = vector.broadcast %23 : vector<16x1xf32> to vector<16x32xf32>
      %25 = arith.subf %19, %24 : vector<16x32xf32>
      %26 = arith.mulf %25, %25 : vector<16x32xf32>
      %cst_20 = arith.constant dense<0.000000e+00> : vector<16xf32>
      %27 = vector.multi_reduction <add>, %26, %cst_20 [1] : vector<16x32xf32> to vector<16xf32>
      %28 = vector.shape_cast %27 : vector<16xf32> to vector<16x1xf32>
      %cst_21 = arith.constant 3.100000e+01 : f32
      %29 = vector.broadcast %cst_21 : f32 to vector<16x1xf32>
      %30 = arith.divf %28, %29 : vector<16x1xf32>
      %c0_22 = arith.constant 0 : index
      %c0_23 = arith.constant 0 : index
      %31 = vector.load %arg3[%c0_22, %c0_23] : memref<1x32xf32, #tpu.memory_space<vmem>>, vector<1x32xf32>
      %32 = vector.broadcast %23 : vector<16x1xf32> to vector<16x32xf32>
      %33 = arith.subf %19, %32 : vector<16x32xf32>
      %34 = vector.broadcast %31 : vector<1x32xf32> to vector<16x32xf32>
      %35 = arith.mulf %34, %33 : vector<16x32xf32>
      %36 = math.sqrt %30 : vector<16x1xf32>
      %cst_24 = arith.constant 9.99999997E-7 : f32
      %37 = vector.broadcast %cst_24 : f32 to vector<16x1xf32>
      %38 = arith.addf %36, %37 : vector<16x1xf32>
      %39 = vector.broadcast %38 : vector<16x1xf32> to vector<16x32xf32>
      %40 = arith.divf %35, %39 : vector<16x32xf32>
      %c0_25 = arith.constant 0 : index
      %c0_26 = arith.constant 0 : index
      %41 = vector.load %arg4[%c0_25, %c0_26] : memref<1x32xf32, #tpu.memory_space<vmem>>, vector<1x32xf32>
      %42 = vector.broadcast %41 : vector<1x32xf32> to vector<16x32xf32>
      %43 = arith.addf %40, %42 : vector<16x32xf32>
      %c0_27 = arith.constant 0 : index
      %c0_28 = arith.constant 0 : index
      %44 = vector.load %arg10[%c0_27, %c0_28] : memref<16x32xf32, #tpu.memory_space<vmem>>, vector<16x32xf32>
      tpu.vector_store %arg10[%c0_27, %c0_28], %43 {strides = array<i32>} : memref<16x32xf32, #tpu.memory_space<vmem>>, vector<16x32xf32>,
      %cst_29 = arith.constant 0.000000e+00 : f32
      %45 = vector.broadcast %cst_29 : f32 to vector<16x32xf32>
      %c0_30 = arith.constant 0 : index
      %c0_31 = arith.constant 0 : index
      %46 = vector.load %arg11[%c0_30, %c0_31] : memref<16x32xf32, #tpu.memory_space<vmem>>, vector<16x32xf32>
      tpu.vector_store %arg11[%c0_30, %c0_31], %45 {strides = array<i32>} : memref<16x32xf32, #tpu.memory_space<vmem>>, vector<16x32xf32>,
    } else {
    }
    %c0 = arith.constant 0 : index
    %c0_1 = arith.constant 0 : index
    %3 = vector.load %arg10[%c0, %c0_1] : memref<16x32xf32, #tpu.memory_space<vmem>>, vector<16x32xf32>
    %c0_2 = arith.constant 0 : index
    %c0_3 = arith.constant 0 : index
    %4 = vector.load %arg5[%c0_2, %c0_3] : memref<32x64xf32, #tpu.memory_space<vmem>>, vector<32x64xf32>
    %cst = arith.constant dense<0.000000e+00> : vector<16x64xf32>
    %5 = tpu.matmul %3, %4, %cst {dimension_numbers = #tpu.dot_dimension_numbers<[1], [0], [0], [1], [0, 0, 1, 1], [], []>} : vector<16x32xf32>, vector<32x64xf32>, vector<16x64xf32> -> vector<16x64xf32>
    %c0_4 = arith.constant 0 : index
    %c0_5 = arith.constant 0 : index
    %6 = vector.load %arg6[%c0_4, %c0_5] : memref<1x64xf32, #tpu.memory_space<vmem>>, vector<1x64xf32>
    %7 = vector.broadcast %6 : vector<1x64xf32> to vector<16x64xf32>
    %8 = arith.addf %5, %7 : vector<16x64xf32>
    %cst_6 = arith.constant 0.000000e+00 : f32
    %9 = vector.broadcast %cst_6 : f32 to vector<16x64xf32>
    %10 = arith.maximumf %8, %9 : vector<16x64xf32>
    %c0_7 = arith.constant 0 : index
    %c0_8 = arith.constant 0 : index
    %11 = vector.load %arg11[%c0_7, %c0_8] : memref<16x32xf32, #tpu.memory_space<vmem>>, vector<16x32xf32>
    %c0_9 = arith.constant 0 : index
    %c0_10 = arith.constant 0 : index
    %12 = vector.load %arg7[%c0_9, %c0_10] : memref<64x32xf32, #tpu.memory_space<vmem>>, vector<64x32xf32>
    %cst_11 = arith.constant dense<0.000000e+00> : vector<16x32xf32>
    %13 = tpu.matmul %10, %12, %cst_11 {dimension_numbers = #tpu.dot_dimension_numbers<[1], [0], [0], [1], [0, 0, 1, 1], [], []>} : vector<16x64xf32>, vector<64x32xf32>, vector<16x32xf32> -> vector<16x32xf32>
    %14 = arith.addf %11, %13 : vector<16x32xf32>
    %c0_12 = arith.constant 0 : index
    %c0_13 = arith.constant 0 : index
    %15 = vector.load %arg11[%c0_12, %c0_13] : memref<16x32xf32, #tpu.memory_space<vmem>>, vector<16x32xf32>
    tpu.vector_store %arg11[%c0_12, %c0_13], %14 {strides = array<i32>} : memref<16x32xf32, #tpu.memory_space<vmem>>, vector<16x32xf32>,
    %c0_i32_14 = arith.constant 0 : i32
    %16 = arith.cmpi eq, %arg1, %c0_i32_14 : i32
    %17 = arith.extui %16 : i1 to i32
    %c0_i32_15 = arith.constant 0 : i32
    %18 = arith.cmpi ne, %17, %c0_i32_15 : i32
    scf.if %18 {
      %c0_16 = arith.constant 0 : index
      %c0_17 = arith.constant 0 : index
      %19 = vector.load %arg11[%c0_16, %c0_17] : memref<16x32xf32, #tpu.memory_space<vmem>>, vector<16x32xf32>
      %c0_18 = arith.constant 0 : index
      %c0_19 = arith.constant 0 : index
      %20 = vector.load %arg8[%c0_18, %c0_19] : memref<1x32xf32, #tpu.memory_space<vmem>>, vector<1x32xf32>
      %21 = vector.broadcast %20 : vector<1x32xf32> to vector<16x32xf32>
      %22 = arith.addf %19, %21 : vector<16x32xf32>
      %c0_20 = arith.constant 0 : index
      %c0_21 = arith.constant 0 : index
      %23 = vector.load %arg2[%c0_20, %c0_21] : memref<16x32xf32, #tpu.memory_space<vmem>>, vector<16x32xf32>
      %24 = arith.addf %22, %23 : vector<16x32xf32>
      %c0_22 = arith.constant 0 : index
      %c0_23 = arith.constant 0 : index
      %25 = vector.load %arg9[%c0_22, %c0_23] : memref<16x32xf32, #tpu.memory_space<vmem>>, vector<16x32xf32>
      tpu.vector_store %arg9[%c0_22, %c0_23], %24 {strides = array<i32>} : memref<16x32xf32, #tpu.memory_space<vmem>>, vector<16x32xf32>,
    } else {
    }
    return
  }
  func.func @transform_0(%arg0: i32, %arg1: i32) -> (i32, i32) {
    %c0_i32 = arith.constant 0 : i32
    %c0_i32_0 = arith.constant 0 : i32
    return %arg0, %c0_i32 : i32, i32
  }
  func.func @transform_1(%arg0: i32, %arg1: i32) -> (i32, i32) {
    %c0_i32 = arith.constant 0 : i32
    %c0_i32_0 = arith.constant 0 : i32
    %c0_i32_1 = arith.constant 0 : i32
    return %c0_i32, %c0_i32_0 : i32, i32
  }
  func.func @transform_2(%arg0: i32, %arg1: i32) -> (i32, i32) {
    %c0_i32 = arith.constant 0 : i32
    %c0_i32_0 = arith.constant 0 : i32
    %c0_i32_1 = arith.constant 0 : i32
    return %c0_i32, %c0_i32_0 : i32, i32
  }
  func.func @transform_3(%arg0: i32, %arg1: i32) -> (i32, i32) {
    %c0_i32 = arith.constant 0 : i32
    %c0_i32_0 = arith.constant 0 : i32
    return %c0_i32, %arg1 : i32, i32
  }
  func.func @transform_4(%arg0: i32, %arg1: i32) -> (i32, i32) {
    %c0_i32 = arith.constant 0 : i32
    %c0_i32_0 = arith.constant 0 : i32
    return %c0_i32, %arg1 : i32, i32
  }
  func.func @transform_5(%arg0: i32, %arg1: i32) -> (i32, i32) {
    %c0_i32 = arith.constant 0 : i32
    %c0_i32_0 = arith.constant 0 : i32
    return %arg1, %c0_i32 : i32, i32
  }
  func.func @transform_6(%arg0: i32, %arg1: i32) -> (i32, i32) {
    %c0_i32 = arith.constant 0 : i32
    %c0_i32_0 = arith.constant 0 : i32
    %c0_i32_1 = arith.constant 0 : i32
    return %c0_i32, %c0_i32_0 : i32, i32
  }
  func.func @transform_7(%arg0: i32, %arg1: i32) -> (i32, i32) {
    %c0_i32 = arith.constant 0 : i32
    %c0_i32_0 = arith.constant 0 : i32
    return %arg0, %c0_i32 : i32, i32
  }
}

module attributes {stable_mosaic.version = 11 : i64} {
  func.func @_attn_sublayer_kernel(%arg0: i32, %arg1: i32, %arg2: memref<1x8x32xf32, #tpu.memory_space<vmem>>, %arg3: memref<1x1x8xf32, #tpu.memory_space<vmem>>, %arg4: memref<1x32xf32, #tpu.memory_space<vmem>>, %arg5: memref<1x32xf32, #tpu.memory_space<vmem>>, %arg6: memref<32x96xf32, #tpu.memory_space<vmem>>, %arg7: memref<1x96xf32, #tpu.memory_space<vmem>>, %arg8: memref<32x32xf32, #tpu.memory_space<vmem>>, %arg9: memref<1x32xf32, #tpu.memory_space<vmem>>, %arg10: memref<1x8x32xf32, #tpu.memory_space<vmem>>, %arg11: memref<8x96xf32, #tpu.memory_space<vmem>>, %arg12: memref<8x32xf32, #tpu.memory_space<vmem>>) attributes {dimension_semantics = [#tpu.dimension_semantics<parallel>, #tpu.dimension_semantics<arbitrary>], iteration_bounds = array<i64: 2, 1>, scalar_prefetch = 0 : i64, scratch_operands = 2 : i64, tpu.core_type = #tpu.core_type<tc>, window_params = [{transform_indices = @transform_0, window_bounds = array<i64: 1, 8, 32>}, {transform_indices = @transform_1, window_bounds = array<i64: 1, 1, 8>}, {pipeline_mode = #tpu.pipeline_mode<synchronous>, transform_indices = @transform_2, window_bounds = array<i64: 1, 32>}, {pipeline_mode = #tpu.pipeline_mode<synchronous>, transform_indices = @transform_3, window_bounds = array<i64: 1, 32>}, {pipeline_mode = #tpu.pipeline_mode<synchronous>, transform_indices = @transform_4, window_bounds = array<i64: 32, 96>}, {pipeline_mode = #tpu.pipeline_mode<synchronous>, transform_indices = @transform_5, window_bounds = array<i64: 1, 96>}, {pipeline_mode = #tpu.pipeline_mode<synchronous>, transform_indices = @transform_6, window_bounds = array<i64: 32, 32>}, {pipeline_mode = #tpu.pipeline_mode<synchronous>, transform_indices = @transform_7, window_bounds = array<i64: 1, 32>}, {transform_indices = @transform_8, window_bounds = array<i64: 1, 8, 32>}]} {
    %c0_i32 = arith.constant 0 : i32
    %0 = arith.cmpi eq, %arg1, %c0_i32 : i32
    %1 = arith.extui %0 : i1 to i32
    %c0_i32_0 = arith.constant 0 : i32
    %2 = arith.cmpi ne, %1, %c0_i32_0 : i32
    scf.if %2 {
      %c0_47 = arith.constant 0 : index
      %c0_48 = arith.constant 0 : index
      %c0_49 = arith.constant 0 : index
      %96 = vector.load %arg2[%c0_47, %c0_48, %c0_49] : memref<1x8x32xf32, #tpu.memory_space<vmem>>, vector<1x8x32xf32>
      %97 = vector.shape_cast %96 : vector<1x8x32xf32> to vector<8x32xf32>
      %cst_50 = arith.constant dense<0.000000e+00> : vector<8xf32>
      %98 = vector.multi_reduction <add>, %97, %cst_50 [1] : vector<8x32xf32> to vector<8xf32>
      %99 = vector.shape_cast %98 : vector<8xf32> to vector<8x1xf32>
      %cst_51 = arith.constant 3.200000e+01 : f32
      %100 = vector.broadcast %cst_51 : f32 to vector<8x1xf32>
      %101 = arith.divf %99, %100 : vector<8x1xf32>
      %102 = vector.broadcast %101 : vector<8x1xf32> to vector<8x32xf32>
      %103 = arith.subf %97, %102 : vector<8x32xf32>
      %104 = arith.mulf %103, %103 : vector<8x32xf32>
      %cst_52 = arith.constant dense<0.000000e+00> : vector<8xf32>
      %105 = vector.multi_reduction <add>, %104, %cst_52 [1] : vector<8x32xf32> to vector<8xf32>
      %106 = vector.shape_cast %105 : vector<8xf32> to vector<8x1xf32>
      %cst_53 = arith.constant 3.100000e+01 : f32
      %107 = vector.broadcast %cst_53 : f32 to vector<8x1xf32>
      %108 = arith.divf %106, %107 : vector<8x1xf32>
      %c0_54 = arith.constant 0 : index
      %c0_55 = arith.constant 0 : index
      %109 = vector.load %arg4[%c0_54, %c0_55] : memref<1x32xf32, #tpu.memory_space<vmem>>, vector<1x32xf32>
      %110 = vector.broadcast %101 : vector<8x1xf32> to vector<8x32xf32>
      %111 = arith.subf %97, %110 : vector<8x32xf32>
      %112 = vector.broadcast %109 : vector<1x32xf32> to vector<8x32xf32>
      %113 = arith.mulf %112, %111 : vector<8x32xf32>
      %114 = math.sqrt %108 : vector<8x1xf32>
      %cst_56 = arith.constant 9.99999997E-7 : f32
      %115 = vector.broadcast %cst_56 : f32 to vector<8x1xf32>
      %116 = arith.addf %114, %115 : vector<8x1xf32>
      %117 = vector.broadcast %116 : vector<8x1xf32> to vector<8x32xf32>
      %118 = arith.divf %113, %117 : vector<8x32xf32>
      %c0_57 = arith.constant 0 : index
      %c0_58 = arith.constant 0 : index
      %119 = vector.load %arg5[%c0_57, %c0_58] : memref<1x32xf32, #tpu.memory_space<vmem>>, vector<1x32xf32>
      %120 = vector.broadcast %119 : vector<1x32xf32> to vector<8x32xf32>
      %121 = arith.addf %118, %120 : vector<8x32xf32>
      %c0_59 = arith.constant 0 : index
      %c0_60 = arith.constant 0 : index
      %122 = vector.load %arg6[%c0_59, %c0_60] : memref<32x96xf32, #tpu.memory_space<vmem>>, vector<32x96xf32>
      %cst_61 = arith.constant dense<0.000000e+00> : vector<8x96xf32>
      %123 = tpu.matmul %121, %122, %cst_61 {dimension_numbers = #tpu.dot_dimension_numbers<[1], [0], [0], [1], [0, 0, 1, 1], [], []>} : vector<8x32xf32>, vector<32x96xf32>, vector<8x96xf32> -> vector<8x96xf32>
      %c0_62 = arith.constant 0 : index
      %c0_63 = arith.constant 0 : index
      %124 = vector.load %arg7[%c0_62, %c0_63] : memref<1x96xf32, #tpu.memory_space<vmem>>, vector<1x96xf32>
      %125 = vector.broadcast %124 : vector<1x96xf32> to vector<8x96xf32>
      %126 = arith.addf %123, %125 : vector<8x96xf32>
      %c0_64 = arith.constant 0 : index
      %c0_65 = arith.constant 0 : index
      %127 = vector.load %arg11[%c0_64, %c0_65] : memref<8x96xf32, #tpu.memory_space<vmem>>, vector<8x96xf32>
      tpu.vector_store %arg11[%c0_64, %c0_65], %126 {strides = array<i32>} : memref<8x96xf32, #tpu.memory_space<vmem>>, vector<8x96xf32>,
    } else {
    }
    %c8_i32 = arith.constant 8 : i32
    %3 = arith.muli %arg1, %c8_i32 : i32
    %4 = tpu.assume_multiple %3, 8 : i32
    %c0 = arith.constant 0 : index
    %c0_1 = arith.constant 0 : index
    %c0_2 = arith.constant 0 : index
    %5 = vector.load %arg3[%c0, %c0_1, %c0_2] : memref<1x1x8xf32, #tpu.memory_space<vmem>>, vector<1x1x8xf32>
    %6 = vector.shape_cast %5 : vector<1x1x8xf32> to vector<1x8xf32>
    %7 = arith.index_cast %4 : i32 to index
    %c0_3 = arith.constant 0 : index
    %8 = vector.load %arg11[%7, %c0_3] : memref<8x96xf32, #tpu.memory_space<vmem>>, vector<8x8xf32>
    %c0_4 = arith.constant 0 : index
    %c32 = arith.constant 32 : index
    %9 = vector.load %arg11[%c0_4, %c32] : memref<8x96xf32, #tpu.memory_space<vmem>>, vector<8x8xf32>
    %c0_5 = arith.constant 0 : index
    %c64 = arith.constant 64 : index
    %10 = vector.load %arg11[%c0_5, %c64] : memref<8x96xf32, #tpu.memory_space<vmem>>, vector<8x8xf32>
    %cst = arith.constant dense<0.000000e+00> : vector<8x8xf32>
    %11 = tpu.matmul %8, %9, %cst {dimension_numbers = #tpu.dot_dimension_numbers<[1], [1], [0], [0], [0, 0, 1, 0], [], []>} : vector<8x8xf32>, vector<8x8xf32>, vector<8x8xf32> -> vector<8x8xf32>
    %12 = vector.broadcast %6 : vector<1x8xf32> to vector<8x8xf32>
    %13 = arith.addf %11, %12 : vector<8x8xf32>
    %cst_6 = arith.constant dense<0xFF800000> : vector<8xf32>
    %14 = vector.multi_reduction <maximumf>, %13, %cst_6 [1] : vector<8x8xf32> to vector<8xf32>
    %15 = vector.shape_cast %14 : vector<8xf32> to vector<8x1xf32>
    %16 = vector.broadcast %15 : vector<8x1xf32> to vector<8x8xf32>
    %17 = arith.subf %13, %16 : vector<8x8xf32>
    %18 = math.exp %17 : vector<8x8xf32>
    %cst_7 = arith.constant dense<0.000000e+00> : vector<8xf32>
    %19 = vector.multi_reduction <add>, %18, %cst_7 [1] : vector<8x8xf32> to vector<8xf32>
    %20 = vector.shape_cast %19 : vector<8xf32> to vector<8x1xf32>
    %cst_8 = arith.constant dense<0.000000e+00> : vector<8x8xf32>
    %21 = tpu.matmul %18, %10, %cst_8 {dimension_numbers = #tpu.dot_dimension_numbers<[1], [0], [0], [1], [0, 0, 1, 1], [], []>} : vector<8x8xf32>, vector<8x8xf32>, vector<8x8xf32> -> vector<8x8xf32>
    %22 = tpu.reciprocal %20 : vector<8x1xf32> -> vector<8x1xf32>
    %23 = vector.broadcast %22 : vector<8x1xf32> to vector<8x8xf32>
    %24 = arith.mulf %21, %23 : vector<8x8xf32>
    %c0_9 = arith.constant 0 : index
    %c0_10 = arith.constant 0 : index
    %25 = vector.load %arg12[%c0_9, %c0_10] : memref<8x32xf32, #tpu.memory_space<vmem>>, vector<8x8xf32>
    tpu.vector_store %arg12[%c0_9, %c0_10], %24 {strides = array<i32>} : memref<8x32xf32, #tpu.memory_space<vmem>>, vector<8x8xf32>,
    %26 = arith.index_cast %4 : i32 to index
    %c8 = arith.constant 8 : index
    %27 = vector.load %arg11[%26, %c8] : memref<8x96xf32, #tpu.memory_space<vmem>>, vector<8x8xf32>
    %c0_11 = arith.constant 0 : index
    %c40 = arith.constant 40 : index
    %28 = vector.load %arg11[%c0_11, %c40] : memref<8x96xf32, #tpu.memory_space<vmem>>, vector<8x8xf32>
    %c0_12 = arith.constant 0 : index
    %c72 = arith.constant 72 : index
    %29 = vector.load %arg11[%c0_12, %c72] : memref<8x96xf32, #tpu.memory_space<vmem>>, vector<8x8xf32>
    %cst_13 = arith.constant dense<0.000000e+00> : vector<8x8xf32>
    %30 = tpu.matmul %27, %28, %cst_13 {dimension_numbers = #tpu.dot_dimension_numbers<[1], [1], [0], [0], [0, 0, 1, 0], [], []>} : vector<8x8xf32>, vector<8x8xf32>, vector<8x8xf32> -> vector<8x8xf32>
    %31 = vector.broadcast %6 : vector<1x8xf32> to vector<8x8xf32>
    %32 = arith.addf %30, %31 : vector<8x8xf32>
    %cst_14 = arith.constant dense<0xFF800000> : vector<8xf32>
    %33 = vector.multi_reduction <maximumf>, %32, %cst_14 [1] : vector<8x8xf32> to vector<8xf32>
    %34 = vector.shape_cast %33 : vector<8xf32> to vector<8x1xf32>
    %35 = vector.broadcast %34 : vector<8x1xf32> to vector<8x8xf32>
    %36 = arith.subf %32, %35 : vector<8x8xf32>
    %37 = math.exp %36 : vector<8x8xf32>
    %cst_15 = arith.constant dense<0.000000e+00> : vector<8xf32>
    %38 = vector.multi_reduction <add>, %37, %cst_15 [1] : vector<8x8xf32> to vector<8xf32>
    %39 = vector.shape_cast %38 : vector<8xf32> to vector<8x1xf32>
    %cst_16 = arith.constant dense<0.000000e+00> : vector<8x8xf32>
    %40 = tpu.matmul %37, %29, %cst_16 {dimension_numbers = #tpu.dot_dimension_numbers<[1], [0], [0], [1], [0, 0, 1, 1], [], []>} : vector<8x8xf32>, vector<8x8xf32>, vector<8x8xf32> -> vector<8x8xf32>
    %41 = tpu.reciprocal %39 : vector<8x1xf32> -> vector<8x1xf32>
    %42 = vector.broadcast %41 : vector<8x1xf32> to vector<8x8xf32>
    %43 = arith.mulf %40, %42 : vector<8x8xf32>
    %c0_17 = arith.constant 0 : index
    %c8_18 = arith.constant 8 : index
    %44 = vector.load %arg12[%c0_17, %c8_18] : memref<8x32xf32, #tpu.memory_space<vmem>>, vector<8x8xf32>
    tpu.vector_store %arg12[%c0_17, %c8_18], %43 {strides = array<i32>} : memref<8x32xf32, #tpu.memory_space<vmem>>, vector<8x8xf32>,
    %45 = arith.index_cast %4 : i32 to index
    %c16 = arith.constant 16 : index
    %46 = vector.load %arg11[%45, %c16] : memref<8x96xf32, #tpu.memory_space<vmem>>, vector<8x8xf32>
    %c0_19 = arith.constant 0 : index
    %c48 = arith.constant 48 : index
    %47 = vector.load %arg11[%c0_19, %c48] : memref<8x96xf32, #tpu.memory_space<vmem>>, vector<8x8xf32>
    %c0_20 = arith.constant 0 : index
    %c80 = arith.constant 80 : index
    %48 = vector.load %arg11[%c0_20, %c80] : memref<8x96xf32, #tpu.memory_space<vmem>>, vector<8x8xf32>
    %cst_21 = arith.constant dense<0.000000e+00> : vector<8x8xf32>
    %49 = tpu.matmul %46, %47, %cst_21 {dimension_numbers = #tpu.dot_dimension_numbers<[1], [1], [0], [0], [0, 0, 1, 0], [], []>} : vector<8x8xf32>, vector<8x8xf32>, vector<8x8xf32> -> vector<8x8xf32>
    %50 = vector.broadcast %6 : vector<1x8xf32> to vector<8x8xf32>
    %51 = arith.addf %49, %50 : vector<8x8xf32>
    %cst_22 = arith.constant dense<0xFF800000> : vector<8xf32>
    %52 = vector.multi_reduction <maximumf>, %51, %cst_22 [1] : vector<8x8xf32> to vector<8xf32>
    %53 = vector.shape_cast %52 : vector<8xf32> to vector<8x1xf32>
    %54 = vector.broadcast %53 : vector<8x1xf32> to vector<8x8xf32>
    %55 = arith.subf %51, %54 : vector<8x8xf32>
    %56 = math.exp %55 : vector<8x8xf32>
    %cst_23 = arith.constant dense<0.000000e+00> : vector<8xf32>
    %57 = vector.multi_reduction <add>, %56, %cst_23 [1] : vector<8x8xf32> to vector<8xf32>
    %58 = vector.shape_cast %57 : vector<8xf32> to vector<8x1xf32>
    %cst_24 = arith.constant dense<0.000000e+00> : vector<8x8xf32>
    %59 = tpu.matmul %56, %48, %cst_24 {dimension_numbers = #tpu.dot_dimension_numbers<[1], [0], [0], [1], [0, 0, 1, 1], [], []>} : vector<8x8xf32>, vector<8x8xf32>, vector<8x8xf32> -> vector<8x8xf32>
    %60 = tpu.reciprocal %58 : vector<8x1xf32> -> vector<8x1xf32>
    %61 = vector.broadcast %60 : vector<8x1xf32> to vector<8x8xf32>
    %62 = arith.mulf %59, %61 : vector<8x8xf32>
    %c0_25 = arith.constant 0 : index
    %c16_26 = arith.constant 16 : index
    %63 = vector.load %arg12[%c0_25, %c16_26] : memref<8x32xf32, #tpu.memory_space<vmem>>, vector<8x8xf32>
    tpu.vector_store %arg12[%c0_25, %c16_26], %62 {strides = array<i32>} : memref<8x32xf32, #tpu.memory_space<vmem>>, vector<8x8xf32>,
    %64 = arith.index_cast %4 : i32 to index
    %c24 = arith.constant 24 : index
    %65 = vector.load %arg11[%64, %c24] : memref<8x96xf32, #tpu.memory_space<vmem>>, vector<8x8xf32>
    %c0_27 = arith.constant 0 : index
    %c56 = arith.constant 56 : index
    %66 = vector.load %arg11[%c0_27, %c56] : memref<8x96xf32, #tpu.memory_space<vmem>>, vector<8x8xf32>
    %c0_28 = arith.constant 0 : index
    %c88 = arith.constant 88 : index
    %67 = vector.load %arg11[%c0_28, %c88] : memref<8x96xf32, #tpu.memory_space<vmem>>, vector<8x8xf32>
    %cst_29 = arith.constant dense<0.000000e+00> : vector<8x8xf32>
    %68 = tpu.matmul %65, %66, %cst_29 {dimension_numbers = #tpu.dot_dimension_numbers<[1], [1], [0], [0], [0, 0, 1, 0], [], []>} : vector<8x8xf32>, vector<8x8xf32>, vector<8x8xf32> -> vector<8x8xf32>
    %69 = vector.broadcast %6 : vector<1x8xf32> to vector<8x8xf32>
    %70 = arith.addf %68, %69 : vector<8x8xf32>
    %cst_30 = arith.constant dense<0xFF800000> : vector<8xf32>
    %71 = vector.multi_reduction <maximumf>, %70, %cst_30 [1] : vector<8x8xf32> to vector<8xf32>
    %72 = vector.shape_cast %71 : vector<8xf32> to vector<8x1xf32>
    %73 = vector.broadcast %72 : vector<8x1xf32> to vector<8x8xf32>
    %74 = arith.subf %70, %73 : vector<8x8xf32>
    %75 = math.exp %74 : vector<8x8xf32>
    %cst_31 = arith.constant dense<0.000000e+00> : vector<8xf32>
    %76 = vector.multi_reduction <add>, %75, %cst_31 [1] : vector<8x8xf32> to vector<8xf32>
    %77 = vector.shape_cast %76 : vector<8xf32> to vector<8x1xf32>
    %cst_32 = arith.constant dense<0.000000e+00> : vector<8x8xf32>
    %78 = tpu.matmul %75, %67, %cst_32 {dimension_numbers = #tpu.dot_dimension_numbers<[1], [0], [0], [1], [0, 0, 1, 1], [], []>} : vector<8x8xf32>, vector<8x8xf32>, vector<8x8xf32> -> vector<8x8xf32>
    %79 = tpu.reciprocal %77 : vector<8x1xf32> -> vector<8x1xf32>
    %80 = vector.broadcast %79 : vector<8x1xf32> to vector<8x8xf32>
    %81 = arith.mulf %78, %80 : vector<8x8xf32>
    %c0_33 = arith.constant 0 : index
    %c24_34 = arith.constant 24 : index
    %82 = vector.load %arg12[%c0_33, %c24_34] : memref<8x32xf32, #tpu.memory_space<vmem>>, vector<8x8xf32>
    tpu.vector_store %arg12[%c0_33, %c24_34], %81 {strides = array<i32>} : memref<8x32xf32, #tpu.memory_space<vmem>>, vector<8x8xf32>,
    %c0_35 = arith.constant 0 : index
    %c0_36 = arith.constant 0 : index
    %83 = vector.load %arg12[%c0_35, %c0_36] : memref<8x32xf32, #tpu.memory_space<vmem>>, vector<8x32xf32>
    %c0_37 = arith.constant 0 : index
    %c0_38 = arith.constant 0 : index
    %84 = vector.load %arg8[%c0_37, %c0_38] : memref<32x32xf32, #tpu.memory_space<vmem>>, vector<32x32xf32>
    %cst_39 = arith.constant dense<0.000000e+00> : vector<8x32xf32>
    %85 = tpu.matmul %83, %84, %cst_39 {dimension_numbers = #tpu.dot_dimension_numbers<[1], [0], [0], [1], [0, 0, 1, 1], [], []>} : vector<8x32xf32>, vector<32x32xf32>, vector<8x32xf32> -> vector<8x32xf32>
    %c0_40 = arith.constant 0 : index
    %c0_41 = arith.constant 0 : index
    %86 = vector.load %arg9[%c0_40, %c0_41] : memref<1x32xf32, #tpu.memory_space<vmem>>, vector<1x32xf32>
    %87 = vector.broadcast %86 : vector<1x32xf32> to vector<8x32xf32>
    %88 = arith.addf %85, %87 : vector<8x32xf32>
    %c0_42 = arith.constant 0 : index
    %89 = arith.index_cast %4 : i32 to index
    %c0_43 = arith.constant 0 : index
    %90 = vector.load %arg2[%c0_42, %89, %c0_43] : memref<1x8x32xf32, #tpu.memory_space<vmem>>, vector<1x8x32xf32>
    %91 = vector.shape_cast %90 : vector<1x8x32xf32> to vector<8x32xf32>
    %92 = arith.addf %88, %91 : vector<8x32xf32>
    %c0_44 = arith.constant 0 : index
    %c0_45 = arith.constant 0 : index
    %c0_46 = arith.constant 0 : index
    %93 = vector.load %arg10[%c0_44, %c0_45, %c0_46] : memref<1x8x32xf32, #tpu.memory_space<vmem>>, vector<1x8x32xf32>
    %94 = vector.shape_cast %93 : vector<1x8x32xf32> to vector<8x32xf32>
    %95 = vector.shape_cast %92 : vector<8x32xf32> to vector<1x8x32xf32>
    tpu.vector_store %arg10[%c0_44, %c0_45, %c0_46], %95 {strides = array<i32>} : memref<1x8x32xf32, #tpu.memory_space<vmem>>, vector<1x8x32xf32>,
    return
  }
  func.func @transform_0(%arg0: i32, %arg1: i32) -> (i32, i32, i32) {
    %c0_i32 = arith.constant 0 : i32
    %c0_i32_0 = arith.constant 0 : i32
    %c0_i32_1 = arith.constant 0 : i32
    return %arg0, %c0_i32, %c0_i32_0 : i32, i32, i32
  }
  func.func @transform_1(%arg0: i32, %arg1: i32) -> (i32, i32, i32) {
    %c0_i32 = arith.constant 0 : i32
    %c0_i32_0 = arith.constant 0 : i32
    %c0_i32_1 = arith.constant 0 : i32
    return %arg0, %c0_i32, %c0_i32_0 : i32, i32, i32
  }
  func.func @transform_2(%arg0: i32, %arg1: i32) -> (i32, i32) {
    %c0_i32 = arith.constant 0 : i32
    %c0_i32_0 = arith.constant 0 : i32
    %c0_i32_1 = arith.constant 0 : i32
    return %c0_i32, %c0_i32_0 : i32, i32
  }
  func.func @transform_3(%arg0: i32, %arg1: i32) -> (i32, i32) {
    %c0_i32 = arith.constant 0 : i32
    %c0_i32_0 = arith.constant 0 : i32
    %c0_i32_1 = arith.constant 0 : i32
    return %c0_i32, %c0_i32_0 : i32, i32
  }
  func.func @transform_4(%arg0: i32, %arg1: i32) -> (i32, i32) {
    %c0_i32 = arith.constant 0 : i32
    %c0_i32_0 = arith.constant 0 : i32
    %c0_i32_1 = arith.constant 0 : i32
    return %c0_i32, %c0_i32_0 : i32, i32
  }
  func.func @transform_5(%arg0: i32, %arg1: i32) -> (i32, i32) {
    %c0_i32 = arith.constant 0 : i32
    %c0_i32_0 = arith.constant 0 : i32
    %c0_i32_1 = arith.constant 0 : i32
    return %c0_i32, %c0_i32_0 : i32, i32
  }
  func.func @transform_6(%arg0: i32, %arg1: i32) -> (i32, i32) {
    %c0_i32 = arith.constant 0 : i32
    %c0_i32_0 = arith.constant 0 : i32
    %c0_i32_1 = arith.constant 0 : i32
    return %c0_i32, %c0_i32_0 : i32, i32
  }
  func.func @transform_7(%arg0: i32, %arg1: i32) -> (i32, i32) {
    %c0_i32 = arith.constant 0 : i32
    %c0_i32_0 = arith.constant 0 : i32
    %c0_i32_1 = arith.constant 0 : i32
    return %c0_i32, %c0_i32_0 : i32, i32
  }
  func.func @transform_8(%arg0: i32, %arg1: i32) -> (i32, i32, i32) {
    %c0_i32 = arith.constant 0 : i32
    %c0_i32_0 = arith.constant 0 : i32
    return %arg0, %arg1, %c0_i32 : i32, i32, i32
  }
}

</mosaic_0001>

<llo_original>
// kernel: encoder_layer_forward.3
$region0: #{encoder_layer_forward.3}
  #allocation0 [shape = 'u32[]', space=smem, size = 0x4, offset = 0x4, fixed_abs, tag = 'smem constant byte address 0x4 - core index']
  #allocation1 [shape = 'u32[144,128]{1,0:T(1,128)}', space=vmem, size = 0x12000, scoped, tag = 'internal scratch']
  #allocation2 [shape = 'f32[16,32]{1,0:T(8,128)}', space=vmem, size = 0x2000, scoped, tag = 'scratch operand']
  #allocation3 [shape = 'f32[16,32]{1,0:T(8,128)}', space=vmem, size = 0x2000, scoped, tag = 'scratch operand']
  %s0 = inlined_call_operand.vmem [shape: f32[16,32], index: 0, kind: input, shape index: {}]
  %s1 = inlined_call_operand.vmem [shape: f32[1,32], index: 1, kind: input, shape index: {}]
  %s2 = inlined_call_operand.vmem [shape: f32[1,32], index: 2, kind: input, shape index: {}]
  %s3 = inlined_call_operand.vmem [shape: f32[32,64], index: 3, kind: input, shape index: {}]
  %s4 = inlined_call_operand.vmem [shape: f32[1,64], index: 4, kind: input, shape index: {}]
  %s5 = inlined_call_operand.vmem [shape: f32[64,32], index: 5, kind: input, shape index: {}]
  %s6 = inlined_call_operand.vmem [shape: f32[1,32], index: 6, kind: input, shape index: {}]
  %s7 = inlined_call_operand.hbm [shape: f32[16,32], index: 7, kind: output, shape index: {}]
  %s8 = sld [smem:[#allocation0]]
  $region46: #{encoder_layer_forward.3} parent=0
    _
  %s10 = ssub.s32 1, %s8
  %s11 = scalar_select 0, %s10, %s8
  $region1: #{encoder_layer_forward.3} parent=0
    #allocation4 [shape = 'u8[8192]{0}', space=vmem, size = 0x2000, scoped, tag = 'output window, operand 0, single buffered']
    #allocation5 [shape = 's32[1]{0}', space=sflag, size = 0x4, scoped, tag = 'scoped memory for encoder_layer_forward.3']
    %12 = vsyncpa [#allocation5], 0
    // Predicated region
    $region2: #{encoder_layer_forward.3} parent=1 // pred_check
      _
    $region3: #{encoder_layer_forward.3} parent=1 // pred_check_branch
      %14 = sbr.rel (0) target = $region5
    $region4: #{encoder_layer_forward.3} parent=1 // pred_region
      _
    $region5: #{encoder_layer_forward.3} parent=1 // pred_fallthru
      _
    // Predicated region
    $region6: #{encoder_layer_forward.3} parent=1 // pred_check
      _
    $region7: #{encoder_layer_forward.3} parent=1 // pred_check_branch
      %16 = sbr.rel (0) target = $region9
    $region8: #{encoder_layer_forward.3} parent=1 // pred_region
      _
    $region9: #{encoder_layer_forward.3} parent=1 // pred_fallthru
      _
    // Predicated region
    $region10: #{encoder_layer_forward.3} parent=1 // pred_check
      _
    $region11: #{encoder_layer_forward.3} parent=1 // pred_check_branch
      %18 = sbr.rel (0) target = $region13
    $region12: #{encoder_layer_forward.3} parent=1 // pred_region
      _
    $region13: #{encoder_layer_forward.3} parent=1 // pred_fallthru
      _
    // Predicated region
    $region14: #{encoder_layer_forward.3} parent=1 // pred_check
      _
    $region15: #{encoder_layer_forward.3} parent=1 // pred_check_branch
      %20 = sbr.rel (0) target = $region17
    $region16: #{encoder_layer_forward.3} parent=1 // pred_region
      _
    $region17: #{encoder_layer_forward.3} parent=1 // pred_fallthru
      _
    // Predicated region
    $region18: #{encoder_layer_forward.3} parent=1 // pred_check
      _
    $region19: #{encoder_layer_forward.3} parent=1 // pred_check_branch
      %22 = sbr.rel (0) target = $region21
    $region20: #{encoder_layer_forward.3} parent=1 // pred_region
      _
    $region21: #{encoder_layer_forward.3} parent=1 // pred_fallthru
      _
    // Predicated region
    $region22: #{encoder_layer_forward.3} parent=1 // pred_check
      _
    $region23: #{encoder_layer_forward.3} parent=1 // pred_check_branch
      %24 = sbr.rel (0) target = $region25
    $region24: #{encoder_layer_forward.3} parent=1 // pred_region
      _
    $region25: #{encoder_layer_forward.3} parent=1 // pred_fallthru
      _
    // Predicated region
    $region26: #{encoder_layer_forward.3} parent=1 // pred_check
      _
    $region27: #{encoder_layer_forward.3} parent=1 // pred_check_branch
      %26 = sbr.rel (0) target = $region29
    $region28: #{encoder_layer_forward.3} parent=1 // pred_region
      _
    $region29: #{encoder_layer_forward.3} parent=1 // pred_fallthru
      _
    %p27 = scmp.eq.s32.totalorder 0, 0
    // Predicated region
    $region30: #{encoder_layer_forward.3} parent=1 // pred_check
      %p28 = pneg %p27
    $region31: #{encoder_layer_forward.3} parent=1 // pred_check_branch
      %30 = sbr.rel (%p28) target = $region33
    $region32: #{encoder_layer_forward.3} parent=1 // pred_region
      %v31 = vld [vmem:[%s0] sm:$0xff]
      %v32 = vld [vmem:[%s0 + $0x8] sm:$0xff]
      %vm33 = vcmask 261120
      %v34 = vsel %vm33, %v31, 0.0
      %35 = vadd.xlane.f32.xlu0 %v34
      %v36 = vpop.xlane.xlu0 %35
      %v37 = vsel %vm33, %v32, 0.0
      %38 = vadd.xlane.f32.xlu0 %v37
      %v39 = vpop.xlane.xlu0 %38
      %v40 = vrcp.pop 32.0
      %v41 = vmul.f32 %v36, %v40
      %v42 = vmul.f32 %v39, %v40
      %v43 = vsub.f32 %v31, %v41
      %v44 = vsub.f32 %v32, %v42
      %v45 = vmul.f32 %v43, %v43
      %v46 = vmul.f32 %v44, %v44
      %v47 = vsel %vm33, %v45, 0.0
      %48 = vadd.xlane.f32.xlu0 %v47
      %v49 = vpop.xlane.xlu0 %48
      %v50 = vsel %vm33, %v46, 0.0
      %51 = vadd.xlane.f32.xlu0 %v50
      %v52 = vpop.xlane.xlu0 %51
      %v53 = vrcp.pop 31.0
      %v54 = vmul.f32 %v49, %v53
      %v55 = vmul.f32 %v52, %v53
      %v56 = vld [vmem:[%s1] sm:$0x1]
      %v58 = vlaneseq
      %v59 = vshrl.u32 %v58, 7
      %v60 = vsub.s32 0, %v59
      %v61 = vrot.slane %v56, %v60
      %v63 = vmul.f32 %v61, %v43
      %v64 = vmul.f32 %v61, %v44
      %v65 = vrsqrt.pop %v54
      %v66 = vmul.f32 %v54, %v65
      %vm67 = vcmp.eq.f32.partialorder %v54, inf
      %v68 = vsel %vm67, %v54, %v66
      %vm69 = vcmp.eq.f32.partialorder %v54, 0.0
      %v70 = vand.u32 %v54, 2147483648
      %v71 = vsel %vm69, %v70, %v68
      %v72 = vrsqrt.pop %v55
      %v73 = vmul.f32 %v55, %v72
      %vm74 = vcmp.eq.f32.partialorder %v55, inf
      %v75 = vsel %vm74, %v55, %v73
      %vm76 = vcmp.eq.f32.partialorder %v55, 0.0
      %v77 = vand.u32 %v55, 2147483648
      %v78 = vsel %vm76, %v77, %v75
      %v79 = vadd.f32 %v71, 1e-06
      %v80 = vadd.f32 %v78, 1e-06
      %v81 = vrcp.pop %v79
      %v82 = vmul.f32 %v63, %v81
      %v83 = vrcp.pop %v80
      %v84 = vmul.f32 %v64, %v83
      %v85 = vld [vmem:[%s2] sm:$0x1]
      %v87 = vlaneseq
      %v88 = vshrl.u32 %v87, 7
      %v89 = vsub.s32 0, %v88
      %v90 = vrot.slane %v85, %v89
      %v92 = vadd.f32 %v82, %v90
      %v93 = vadd.f32 %v84, %v90
      %94 = vst.msk [vmem:[#allocation2] sm:$0xff] %vm33, %v92
      %95 = vst.msk [vmem:[#allocation2 + $0x8] sm:$0xff] %vm33, %v93
      %96 = vst.msk [vmem:[#allocation3] sm:$0xff] %vm33, 0.0
      %97 = vst.msk [vmem:[#allocation3 + $0x8] sm:$0xff] %vm33, 0.0
    $region33: #{encoder_layer_forward.3} parent=1 // pred_fallthru
      _
    %v98 = vld [vmem:[#allocation2] sm:$0xff]
    %v99 = vld [vmem:[#allocation2 + $0x8] sm:$0xff]
    %v100 = vld [vmem:[%s3] sm:$0xff]
    %v101 = vld [vmem:[%s3 + $0x8] sm:$0xff]
    %v102 = vld [vmem:[%s3 + $0x10] sm:$0xff]
    %v103 = vld [vmem:[%s3 + $0x18] sm:$0xff]
    %v104 = vld [vmem:[%s4] sm:$0x1]
    %v106 = vlaneseq
    %v107 = vshrl.u32 %v106, 7
    %v108 = vsub.s32 0, %v107
    %v109 = vrot.slane %v104, %v108
    %vm111 = vcmask 261120
    %v113 = vsel %vm111, %v98, 0
    %v116 = vsel %vm111, %v99, 0
    %118 = vmatprep.subr.mxu0 0.0
    %119 = vmatpush1.msra.mxu0 %v100
    %120 = vmatprep.subr.mxu0 0.0
    %121 = vmatpush1.msra.mxu0 %v101
    %122 = vmatprep.subr.mxu0 0.0
    %123 = vmatpush1.msra.mxu0 %v102
    %124 = vmatprep.subr.mxu0 0.0
    %125 = vmatpush1.msra.mxu0 %v103
    %126 = vmatprep.subr.mxu0 0.0
    %127 = vmatpush1.msra.mxu0 0.0
    %128 = vmatprep.subr.mxu0 0.0
    %129 = vmatpush1.msra.mxu0 0.0
    %130 = vmatprep.subr.mxu0 0.0
    %131 = vmatpush1.msra.mxu0 0.0
    %132 = vmatprep.subr.mxu0 0.0
    %133 = vmatpush1.msra.mxu0 0.0
    %134 = vmatprep.subr.mxu0 0.0
    %135 = vmatpush1.msra.mxu0 0.0
    %136 = vmatprep.subr.mxu0 0.0
    %137 = vmatpush1.msra.mxu0 0.0
    %138 = vmatprep.subr.mxu0 0.0
    %139 = vmatpush1.msra.mxu0 0.0
    %140 = vmatprep.subr.mxu0 0.0
    %141 = vmatpush1.msra.mxu0 0.0
    %142 = vmatprep.subr.mxu0 0.0
    %143 = vmatpush1.msra.mxu0 0.0
    %144 = vmatprep.subr.mxu0 0.0
    %145 = vmatpush1.msra.mxu0 0.0
    %146 = vmatprep.subr.mxu0 0.0
    %147 = vmatpush1.msra.mxu0 0.0
    %148 = vmatprep.subr.mxu0 0.0
    %149 = vmatpush1.msra.mxu0 0.0
    %150 = vmatprep.subr.mxu0 0.0
    %151 = vmatpush1.msra.mxu0 0.0
    %152 = vmatprep.subr.mxu0 0.0
    %153 = vmatpush1.msra.mxu0 0.0
    %154 = vmatprep.subr.mxu0 0.0
    %155 = vmatpush1.msra.mxu0 0.0
    %156 = vmatprep.subr.mxu0 0.0
    %157 = vmatpush1.msra.mxu0 0.0
    %158 = vmatprep.subr.mxu0 0.0
    %159 = vmatpush1.msra.mxu0 0.0
    %160 = vmatprep.subr.mxu0 0.0
    %161 = vmatpush1.msra.mxu0 0.0
    %162 = vmatprep.subr.mxu0 0.0
    %163 = vmatpush1.msra.mxu0 0.0
    %164 = vmatprep.subr.mxu0 0.0
    %165 = vmatpush1.msra.mxu0 0.0
    %166 = vmatprep.subr.mxu0 0.0
    %167 = vmatpush1.msra.mxu0 0.0
    %168 = vmatprep.subr.mxu0 0.0
    %169 = vmatpush1.msra.mxu0 0.0
    %170 = vmatprep.subr.mxu0 0.0
    %171 = vmatpush1.msra.mxu0 0.0
    %172 = vmatprep.subr.mxu0 0.0
    %173 = vmatpush1.msra.mxu0 0.0
    %174 = vmatprep.subr.mxu0 0.0
    %175 = vmatpush1.msra.mxu0 0.0
    %176 = vmatprep.subr.mxu0 0.0
    %177 = vmatpush1.msra.mxu0 0.0
    %178 = vmatprep.subr.mxu0 0.0
    %179 = vmatpush1.msra.mxu0 0.0
    %180 = vmatprep.subr.mxu0 0.0
    %181 = vmatpush1.msra.mxu0 0.0
    %182 = vmatprep.mubr.f32.mxu0 0.0
    %183 = vmatmul.mubr.f32.gmra.mrb[0].mxu0 %v113
    %v184 = vpop.f32.mrb[0].mxu0
    %v185 = vadd.f32 %v109, %v184
    %v186 = vpop.f32.mrb[0].mxu0
    %187 = vmatprep.mubr.f32.mxu0 0.0
    %188 = vmatmul.mubr.f32.gmra.mrb[0].mxu0 %v116
    %v189 = vpop.f32.mrb[0].mxu0
    %v190 = vadd.f32 %v109, %v189
    %v191 = vpop.f32.mrb[0].mxu0
    %192 = vdwg.mxu0
    %v193 = vmax.f32 %v185, 0.0
    %v194 = vmax.f32 %v190, 0.0
    %v195 = vld [vmem:[#allocation3] sm:$0xff]
    %v196 = vld [vmem:[#allocation3 + $0x8] sm:$0xff]
    %v197 = vld [vmem:[%s5] sm:$0xff]
    %v198 = vld [vmem:[%s5 + $0x8] sm:$0xff]
    %v199 = vld [vmem:[%s5 + $0x10] sm:$0xff]
    %v200 = vld [vmem:[%s5 + $0x18] sm:$0xff]
    %v201 = vld [vmem:[%s5 + $0x20] sm:$0xff]
    %v202 = vld [vmem:[%s5 + $0x28] sm:$0xff]
    %v203 = vld [vmem:[%s5 + $0x30] sm:$0xff]
    %v204 = vld [vmem:[%s5 + $0x38] sm:$0xff]
    %vm205 = vcmask 523264
    %v207 = vsel %vm205, %v193, 0
    %v210 = vsel %vm205, %v194, 0
    %212 = vmatprep.subr.mxu0 0.0
    %213 = vmatpush1.msra.mxu0 %v197
    %214 = vmatprep.subr.mxu0 0.0
    %215 = vmatpush1.msra.mxu0 %v198
    %216 = vmatprep.subr.mxu0 0.0
    %217 = vmatpush1.msra.mxu0 %v199
    %218 = vmatprep.subr.mxu0 0.0
    %219 = vmatpush1.msra.mxu0 %v200
    %220 = vmatprep.subr.mxu0 0.0
    %221 = vmatpush1.msra.mxu0 %v201
    %222 = vmatprep.subr.mxu0 0.0
    %223 = vmatpush1.msra.mxu0 %v202
    %224 = vmatprep.subr.mxu0 0.0
    %225 = vmatpush1.msra.mxu0 %v203
    %226 = vmatprep.subr.mxu0 0.0
    %227 = vmatpush1.msra.mxu0 %v204
    %228 = vmatprep.subr.mxu0 0.0
    %229 = vmatpush1.msra.mxu0 0.0
    %230 = vmatprep.subr.mxu0 0.0
    %231 = vmatpush1.msra.mxu0 0.0
    %232 = vmatprep.subr.mxu0 0.0
    %233 = vmatpush1.msra.mxu0 0.0
    %234 = vmatprep.subr.mxu0 0.0
    %235 = vmatpush1.msra.mxu0 0.0
    %236 = vmatprep.subr.mxu0 0.0
    %237 = vmatpush1.msra.mxu0 0.0
    %238 = vmatprep.subr.mxu0 0.0
    %239 = vmatpush1.msra.mxu0 0.0
    %240 = vmatprep.subr.mxu0 0.0
    %241 = vmatpush1.msra.mxu0 0.0
    %242 = vmatprep.subr.mxu0 0.0
    %243 = vmatpush1.msra.mxu0 0.0
    %244 = vmatprep.subr.mxu0 0.0
    %245 = vmatpush1.msra.mxu0 0.0
    %246 = vmatprep.subr.mxu0 0.0
    %247 = vmatpush1.msra.mxu0 0.0
    %248 = vmatprep.subr.mxu0 0.0
    %249 = vmatpush1.msra.mxu0 0.0
    %250 = vmatprep.subr.mxu0 0.0
    %251 = vmatpush1.msra.mxu0 0.0
    %252 = vmatprep.subr.mxu0 0.0
    %253 = vmatpush1.msra.mxu0 0.0
    %254 = vmatprep.subr.mxu0 0.0
    %255 = vmatpush1.msra.mxu0 0.0
    %256 = vmatprep.subr.mxu0 0.0
    %257 = vmatpush1.msra.mxu0 0.0
    %258 = vmatprep.subr.mxu0 0.0
    %259 = vmatpush1.msra.mxu0 0.0
    %260 = vmatprep.subr.mxu0 0.0
    %261 = vmatpush1.msra.mxu0 0.0
    %262 = vmatprep.subr.mxu0 0.0
    %263 = vmatpush1.msra.mxu0 0.0
    %264 = vmatprep.subr.mxu0 0.0
    %265 = vmatpush1.msra.mxu0 0.0
    %266 = vmatprep.subr.mxu0 0.0
    %267 = vmatpush1.msra.mxu0 0.0
    %268 = vmatprep.subr.mxu0 0.0
    %269 = vmatpush1.msra.mxu0 0.0
    %270 = vmatprep.subr.mxu0 0.0
    %271 = vmatpush1.msra.mxu0 0.0
    %272 = vmatprep.subr.mxu0 0.0
    %273 = vmatpush1.msra.mxu0 0.0
    %274 = vmatprep.subr.mxu0 0.0
    %275 = vmatpush1.msra.mxu0 0.0
    %276 = vmatprep.mubr.f32.mxu0 0.0
    %277 = vmatmul.mubr.f32.gmra.mrb[0].mxu0 %v207
    %v278 = vpop.f32.mrb[0].mxu0
    %v279 = vadd.f32 0.0, %v278
    %v280 = vpop.f32.mrb[0].mxu0
    %281 = vmatprep.mubr.f32.mxu0 0.0
    %282 = vmatmul.mubr.f32.gmra.mrb[0].mxu0 %v210
    %v283 = vpop.f32.mrb[0].mxu0
    %v284 = vadd.f32 0.0, %v283
    %v285 = vpop.f32.mrb[0].mxu0
    %286 = vdwg.mxu0
    %v287 = vadd.f32 %v195, %v279
    %v288 = vadd.f32 %v196, %v284
    %289 = vst.msk [vmem:[#allocation3] sm:$0xff] %vm111, %v287
    %290 = vst.msk [vmem:[#allocation3 + $0x8] sm:$0xff] %vm111, %v288
    // Predicated region
    $region34: #{encoder_layer_forward.3} parent=1 // pred_check
      %p291 = pneg %p27
    $region35: #{encoder_layer_forward.3} parent=1 // pred_check_branch
      %293 = sbr.rel (%p291) target = $region37
    $region36: #{encoder_layer_forward.3} parent=1 // pred_region
      %v294 = vld [vmem:[#allocation3] sm:$0xff]
      %v295 = vld [vmem:[#allocation3 + $0x8] sm:$0xff]
      %v296 = vld [vmem:[%s6] sm:$0x1]
      %v298 = vlaneseq
      %v299 = vshrl.u32 %v298, 7
      %v300 = vsub.s32 0, %v299
      %v301 = vrot.slane %v296, %v300
      %v303 = vadd.f32 %v294, %v301
      %v304 = vadd.f32 %v295, %v301
      %v305 = vld [vmem:[%s0] sm:$0xff]
      %v306 = vld [vmem:[%s0 + $0x8] sm:$0xff]
      %v307 = vadd.f32 %v303, %v305
      %v308 = vadd.f32 %v304, %v306
      %309 = vst.msk [vmem:[#allocation4] sm:$0xff] %vm111, %v307
      %310 = vst.msk [vmem:[#allocation4 + $0x8] sm:$0xff] %vm111, %v308
    $region37: #{encoder_layer_forward.3} parent=1 // pred_fallthru
      _
    // Predicated region
    $region38: #{encoder_layer_forward.3} parent=1 // pred_check
      _
    $region39: #{encoder_layer_forward.3} parent=1 // pred_check_branch
      %312 = sbr.rel (0) target = $region41
    $region40: #{encoder_layer_forward.3} parent=1 // pred_region
      %s314 = ssub.s32 256, 256
      %315 = vsyncadd [#allocation5], %s314
      %s316 = sshll.u32 [#allocation4], 4
      %s317 = int_to_ptr.vmem [resolvable:$true] %s316
      %322 = dma.vmem_to_hbm [thread:$0]  %s317, 256, %s7, [#allocation5], 128, 128, 8
    $region41: #{encoder_layer_forward.3} parent=1 // pred_fallthru
      _
    // Predicated region
    $region42: #{encoder_layer_forward.3} parent=1 // pred_check
      _
    $region43: #{encoder_layer_forward.3} parent=1 // pred_check_branch
      %324 = sbr.rel (0) target = $region45
    $region44: #{encoder_layer_forward.3} parent=1 // pred_region
      %325 = dma.done [#allocation5], 256
    $region45: #{encoder_layer_forward.3} parent=1 // pred_fallthru
      _
    %326 = vsyncpa [#allocation5], 1

// kernel: encoder_layer_forward.2
$region0: #{encoder_layer_forward.2}
  #allocation0 [shape = 'u32[]', space=smem, size = 0x4, offset = 0x4, fixed_abs, tag = 'smem constant byte address 0x4 - core index']
  #allocation1 [shape = 'u32[144,128]{1,0:T(1,128)}', space=vmem, size = 0x12000, scoped, tag = 'internal scratch']
  #allocation2 [shape = 'f32[8,96]{1,0:T(8,128)}', space=vmem, size = 0x1000, scoped, tag = 'scratch operand']
  #allocation3 [shape = 'f32[8,32]{1,0:T(8,128)}', space=vmem, size = 0x1000, scoped, tag = 'scratch operand']
  %s0 = inlined_call_operand.vmem [shape: f32[2,8,32], index: 0, kind: input, shape index: {}]
  %s1 = inlined_call_operand.vmem [shape: f32[2,1,8], index: 1, kind: input, shape index: {}]
  %s2 = inlined_call_operand.vmem [shape: f32[1,32], index: 2, kind: input, shape index: {}]
  %s3 = inlined_call_operand.vmem [shape: f32[1,32], index: 3, kind: input, shape index: {}]
  %s4 = inlined_call_operand.vmem [shape: f32[32,96], index: 4, kind: input, shape index: {}]
  %s5 = inlined_call_operand.vmem [shape: f32[1,96], index: 5, kind: input, shape index: {}]
  %s6 = inlined_call_operand.vmem [shape: f32[32,32], index: 6, kind: input, shape index: {}]
  %s7 = inlined_call_operand.vmem [shape: f32[1,32], index: 7, kind: input, shape index: {}]
  %s8 = inlined_call_operand.vmem [shape: f32[2,8,32], index: 8, kind: output, shape index: {}]
  %s9 = sld [smem:[#allocation0]]
  $region69: #{encoder_layer_forward.2} parent=0
    _
  %s11 = ssub.s32 1, %s9
  %s12 = scalar_select 0, %s11, %s9
  loop: start=0, step=1, limit=4
  $region2: #{encoder_layer_forward.2} parent=0 // loop_pre_header
    _
  $region3: #{encoder_layer_forward.2} parent=0 // loop_header
    %s14 = sphi 0, %s18
    %p15 = scmp.ge.s32.totalorder %s14, 4
    %s21 = sphi 0, %s33
    %s22 = sphi 0, %s29
    %s23 = sphi 0, %s21
    %s24 = sphi 0, %s22
    %s25 = sphi 0, %s23
    %s26 = sphi 0, %s24
    %s36 = sphi 0, %s38
    %s39 = sphi 0, %s36
    %s40 = sphi 0, %s39
    %s56 = sphi 0, %s40
    %s62 = sphi 0, %s64
    %s65 = sphi 0, %s62
    %s66 = sphi 0, %s65
    %s82 = sphi 0, %s66
    %s86 = sphi 0, %s86
    %s88 = sphi 0, %s86
    %s89 = sphi 0, %s88
    %s103 = sphi 0, %s89
    %s107 = sphi 0, %s107
    %s109 = sphi 0, %s107
    %s110 = sphi 0, %s109
    %s124 = sphi 0, %s110
    %s128 = sphi 0, %s128
    %s130 = sphi 0, %s128
    %s131 = sphi 0, %s130
    %s145 = sphi 0, %s131
    %s149 = sphi 0, %s149
    %s151 = sphi 0, %s149
    %s152 = sphi 0, %s151
    %s166 = sphi 0, %s152
    %s170 = sphi 0, %s170
    %s172 = sphi 0, %s170
    %s173 = sphi 0, %s172
    %s187 = sphi 0, %s173
    %s191 = sphi 0, %s191
    %s193 = sphi 0, %s191
    %s194 = sphi 0, %s193
    %s208 = sphi 0, %s194
    %s216 = sphi 0, %s218
    %s219 = sphi 0, %s216
    %s220 = sphi 0, %s219
    %s236 = sphi 0, %s220
  $region4: #{encoder_layer_forward.2} parent=0 // loop_header_branch
    %17 = sbr.rel (%p15) target = $region8
  $region5: #{encoder_layer_forward.2} parent=0 // loop_body
    %s19 = ssub.s32 %s14, 1
    %s20 = ssub.s32 %s14, 2
    %s27 = sadd.s32 1, %s22
    %p28 = scmp.ge.s32.totalorder %s27, 1
    %s29 = scalar_select %p28, 0, %s27
    %s30 = sadd.s32 1, %s21
    %s31 = scalar_select %p28, %s30, %s21
    %p32 = scmp.ge.s32.totalorder %s31, 2
    %s33 = scalar_select %p32, 0, %s31
    %s34 = ssub.s32 %s21, %s33
    %p35 = scmp.eq.s32.totalorder %s34, 0
    %s37 = sadd.s32 %s36, 1
    %s38 = scalar_select %p35, %s36, %s37
    %p41 = pneg %p35
    %p42 = scmp.eq.s32.totalorder %s14, 1
    %p43 = por %p41, %p42
    %p44 = scmp.ne.s32.totalorder %s36, %s39
    %p45 = scmp.eq.s32.totalorder %s14, 0
    %p46 = por %p44, %p45
    %p47 = scmp.ne.s32.totalorder %s36, %s39
    %p48 = scmp.eq.s32.totalorder %s19, 1
    %p49 = por %p47, %p48
    %p50 = scmp.ne.s32.totalorder %s39, %s40
    %p51 = scmp.eq.s32.totalorder %s19, 0
    %p52 = por %p50, %p51
    %p53 = scmp.ne.s32.totalorder %s39, %s40
    %p54 = scmp.eq.s32.totalorder %s20, 1
    %p55 = por %p53, %p54
    %p57 = scmp.ne.s32.totalorder %s40, %s56
    %p58 = scmp.eq.s32.totalorder %s20, 0
    %p59 = por %p57, %p58
    %s60 = ssub.s32 %s21, %s33
    %p61 = scmp.eq.s32.totalorder %s60, 0
    %s63 = sadd.s32 %s62, 1
    %s64 = scalar_select %p61, %s62, %s63
    %p67 = pneg %p61
    %p68 = scmp.eq.s32.totalorder %s14, 1
    %p69 = por %p67, %p68
    %p70 = scmp.ne.s32.totalorder %s62, %s65
    %p71 = scmp.eq.s32.totalorder %s14, 0
    %p72 = por %p70, %p71
    %p73 = scmp.ne.s32.totalorder %s62, %s65
    %p74 = scmp.eq.s32.totalorder %s19, 1
    %p75 = por %p73, %p74
    %p76 = scmp.ne.s32.totalorder %s65, %s66
    %p77 = scmp.eq.s32.totalorder %s19, 0
    %p78 = por %p76, %p77
    %p79 = scmp.ne.s32.totalorder %s65, %s66
    %p80 = scmp.eq.s32.totalorder %s20, 1
    %p81 = por %p79, %p80
    %p83 = scmp.ne.s32.totalorder %s66, %s82
    %p84 = scmp.eq.s32.totalorder %s20, 0
    %p85 = por %p83, %p84
    %s87 = sadd.s32 %s86, 1
    %p90 = scmp.eq.s32.totalorder %s14, 1
    %p91 = scmp.ne.s32.totalorder %s86, %s88
    %p92 = scmp.eq.s32.totalorder %s14, 0
    %p93 = por %p91, %p92
    %p94 = scmp.ne.s32.totalorder %s86, %s88
    %p95 = scmp.eq.s32.totalorder %s19, 1
    %p96 = por %p94, %p95
    %p97 = scmp.ne.s32.totalorder %s88, %s89
    %p98 = scmp.eq.s32.totalorder %s19, 0
    %p99 = por %p97, %p98
    %p100 = scmp.ne.s32.totalorder %s88, %s89
    %p101 = scmp.eq.s32.totalorder %s20, 1
    %p102 = por %p100, %p101
    %p104 = scmp.ne.s32.totalorder %s89, %s103
    %p105 = scmp.eq.s32.totalorder %s20, 0
    %p106 = por %p104, %p105
    %s108 = sadd.s32 %s107, 1
    %p111 = scmp.eq.s32.totalorder %s14, 1
    %p112 = scmp.ne.s32.totalorder %s107, %s109
    %p113 = scmp.eq.s32.totalorder %s14, 0
    %p114 = por %p112, %p113
    %p115 = scmp.ne.s32.totalorder %s107, %s109
    %p116 = scmp.eq.s32.totalorder %s19, 1
    %p117 = por %p115, %p116
    %p118 = scmp.ne.s32.totalorder %s109, %s110
    %p119 = scmp.eq.s32.totalorder %s19, 0
    %p120 = por %p118, %p119
    %p121 = scmp.ne.s32.totalorder %s109, %s110
    %p122 = scmp.eq.s32.totalorder %s20, 1
    %p123 = por %p121, %p122
    %p125 = scmp.ne.s32.totalorder %s110, %s124
    %p126 = scmp.eq.s32.totalorder %s20, 0
    %p127 = por %p125, %p126
    %s129 = sadd.s32 %s128, 1
    %p132 = scmp.eq.s32.totalorder %s14, 1
    %p133 = scmp.ne.s32.totalorder %s128, %s130
    %p134 = scmp.eq.s32.totalorder %s14, 0
    %p135 = por %p133, %p134
    %p136 = scmp.ne.s32.totalorder %s128, %s130
    %p137 = scmp.eq.s32.totalorder %s19, 1
    %p138 = por %p136, %p137
    %p139 = scmp.ne.s32.totalorder %s130, %s131
    %p140 = scmp.eq.s32.totalorder %s19, 0
    %p141 = por %p139, %p140
    %p142 = scmp.ne.s32.totalorder %s130, %s131
    %p143 = scmp.eq.s32.totalorder %s20, 1
    %p144 = por %p142, %p143
    %p146 = scmp.ne.s32.totalorder %s131, %s145
    %p147 = scmp.eq.s32.totalorder %s20, 0
    %p148 = por %p146, %p147
    %s150 = sadd.s32 %s149, 1
    %p153 = scmp.eq.s32.totalorder %s14, 1
    %p154 = scmp.ne.s32.totalorder %s149, %s151
    %p155 = scmp.eq.s32.totalorder %s14, 0
    %p156 = por %p154, %p155
    %p157 = scmp.ne.s32.totalorder %s149, %s151
    %p158 = scmp.eq.s32.totalorder %s19, 1
    %p159 = por %p157, %p158
    %p160 = scmp.ne.s32.totalorder %s151, %s152
    %p161 = scmp.eq.s32.totalorder %s19, 0
    %p162 = por %p160, %p161
    %p163 = scmp.ne.s32.totalorder %s151, %s152
    %p164 = scmp.eq.s32.totalorder %s20, 1
    %p165 = por %p163, %p164
    %p167 = scmp.ne.s32.totalorder %s152, %s166
    %p168 = scmp.eq.s32.totalorder %s20, 0
    %p169 = por %p167, %p168
    %s171 = sadd.s32 %s170, 1
    %p174 = scmp.eq.s32.totalorder %s14, 1
    %p175 = scmp.ne.s32.totalorder %s170, %s172
    %p176 = scmp.eq.s32.totalorder %s14, 0
    %p177 = por %p175, %p176
    %p178 = scmp.ne.s32.totalorder %s170, %s172
    %p179 = scmp.eq.s32.totalorder %s19, 1
    %p180 = por %p178, %p179
    %p181 = scmp.ne.s32.totalorder %s172, %s173
    %p182 = scmp.eq.s32.totalorder %s19, 0
    %p183 = por %p181, %p182
    %p184 = scmp.ne.s32.totalorder %s172, %s173
    %p185 = scmp.eq.s32.totalorder %s20, 1
    %p186 = por %p184, %p185
    %p188 = scmp.ne.s32.totalorder %s173, %s187
    %p189 = scmp.eq.s32.totalorder %s20, 0
    %p190 = por %p188, %p189
    %s192 = sadd.s32 %s191, 1
    %p195 = scmp.eq.s32.totalorder %s14, 1
    %p196 = scmp.ne.s32.totalorder %s191, %s193
    %p197 = scmp.eq.s32.totalorder %s14, 0
    %p198 = por %p196, %p197
    %p199 = scmp.ne.s32.totalorder %s191, %s193
    %p200 = scmp.eq.s32.totalorder %s19, 1
    %p201 = por %p199, %p200
    %p202 = scmp.ne.s32.totalorder %s193, %s194
    %p203 = scmp.eq.s32.totalorder %s19, 0
    %p204 = por %p202, %p203
    %p205 = scmp.ne.s32.totalorder %s193, %s194
    %p206 = scmp.eq.s32.totalorder %s20, 1
    %p207 = por %p205, %p206
    %p209 = scmp.ne.s32.totalorder %s194, %s208
    %p210 = scmp.eq.s32.totalorder %s20, 0
    %p211 = por %p209, %p210
    %s212 = ssub.s32 %s21, %s33
    %s213 = ssub.s32 %s22, %s29
    %s214 = sor.u32 %s212, %s213
    %p215 = scmp.eq.s32.totalorder %s214, 0
    %s217 = sadd.s32 %s216, 1
    %s218 = scalar_select %p215, %s216, %s217
    %p221 = pneg %p215
    %p222 = scmp.eq.s32.totalorder %s14, 1
    %p223 = por %p221, %p222
    %p224 = scmp.ne.s32.totalorder %s216, %s219
    %p225 = scmp.eq.s32.totalorder %s14, 0
    %p226 = por %p224, %p225
    %p227 = scmp.ne.s32.totalorder %s216, %s219
    %p228 = scmp.eq.s32.totalorder %s19, 1
    %p229 = por %p227, %p228
    %p230 = scmp.ne.s32.totalorder %s219, %s220
    %p231 = scmp.eq.s32.totalorder %s19, 0
    %p232 = por %p230, %p231
    %p233 = scmp.ne.s32.totalorder %s219, %s220
    %p234 = scmp.eq.s32.totalorder %s20, 1
    %p235 = por %p233, %p234
    %p237 = scmp.ne.s32.totalorder %s220, %s236
    %p238 = scmp.eq.s32.totalorder %s20, 0
    %p239 = por %p237, %p238
    %p240 = scmp.le.s32.totalorder 1, %s14
    %p241 = scmp.lt.s32.totalorder %s14, 3
    %p242 = pnand %p240, %p241
    %p243 = pneg %p242
    // Predicated region
    $region9: #{encoder_layer_forward.2} parent=5 // pred_check
      _
    $region10: #{encoder_layer_forward.2} parent=5 // pred_check_branch
      %245 = sbr.rel (%p242) target = $region12
    $region11: #{encoder_layer_forward.2} parent=5 // pred_region
      %s246 = ssub.s32 %s14, 1
      // Predicated region
      $region13: #{encoder_layer_forward.2} parent=11 // pred_check
        %p247 = pneg %p99
      $region14: #{encoder_layer_forward.2} parent=11 // pred_check_branch
        %249 = sbr.rel (%p247) target = $region16
      $region15: #{encoder_layer_forward.2} parent=11 // pred_region
        _
      $region16: #{encoder_layer_forward.2} parent=11 // pred_fallthru
        _
      // Predicated region
      $region17: #{encoder_layer_forward.2} parent=11 // pred_check
        %p250 = pneg %p120
      $region18: #{encoder_layer_forward.2} parent=11 // pred_check_branch
        %252 = sbr.rel (%p250) target = $region20
      $region19: #{encoder_layer_forward.2} parent=11 // pred_region
        _
      $region20: #{encoder_layer_forward.2} parent=11 // pred_fallthru
        _
      // Predicated region
      $region21: #{encoder_layer_forward.2} parent=11 // pred_check
        %p253 = pneg %p141
      $region22: #{encoder_layer_forward.2} parent=11 // pred_check_branch
        %255 = sbr.rel (%p253) target = $region24
      $region23: #{encoder_layer_forward.2} parent=11 // pred_region
        _
      $region24: #{encoder_layer_forward.2} parent=11 // pred_fallthru
        _
      // Predicated region
      $region25: #{encoder_layer_forward.2} parent=11 // pred_check
        %p256 = pneg %p162
      $region26: #{encoder_layer_forward.2} parent=11 // pred_check_branch
        %258 = sbr.rel (%p256) target = $region28
      $region27: #{encoder_layer_forward.2} parent=11 // pred_region
        _
      $region28: #{encoder_layer_forward.2} parent=11 // pred_fallthru
        _
      // Predicated region
      $region29: #{encoder_layer_forward.2} parent=11 // pred_check
        %p259 = pneg %p183
      $region30: #{encoder_layer_forward.2} parent=11 // pred_check_branch
        %261 = sbr.rel (%p259) target = $region32
      $region31: #{encoder_layer_forward.2} parent=11 // pred_region
        _
      $region32: #{encoder_layer_forward.2} parent=11 // pred_fallthru
        _
      // Predicated region
      $region33: #{encoder_layer_forward.2} parent=11 // pred_check
        %p262 = pneg %p204
      $region34: #{encoder_layer_forward.2} parent=11 // pred_check_branch
        %264 = sbr.rel (%p262) target = $region36
      $region35: #{encoder_layer_forward.2} parent=11 // pred_region
        _
      $region36: #{encoder_layer_forward.2} parent=11 // pred_fallthru
        _
    $region12: #{encoder_layer_forward.2} parent=5 // pred_fallthru
      _
    %p265 = scmp.lt.s32.totalorder %s14, 2
    // Predicated region
    $region37: #{encoder_layer_forward.2} parent=5 // pred_check
      %p266 = pneg %p265
    $region38: #{encoder_layer_forward.2} parent=5 // pred_check_branch
      %268 = sbr.rel (%p266) target = $region40
    $region39: #{encoder_layer_forward.2} parent=5 // pred_region
      // Predicated region
      $region41: #{encoder_layer_forward.2} parent=39 // pred_check
        %p269 = pneg %p46
      $region42: #{encoder_layer_forward.2} parent=39 // pred_check_branch
        %271 = sbr.rel (%p269) target = $region44
      $region43: #{encoder_layer_forward.2} parent=39 // pred_region
        %p272 = scmp.lt.s32.totalorder %s21, 1
        %s273 = scalar_select %p272, %s21, 1
        %s274 = smul.addr %s273, 8
        %s275 = scalar_lea.vmem %s0, %s274
      $region44: #{encoder_layer_forward.2} parent=39 // pred_fallthru
        _
      // Predicated region
      $region45: #{encoder_layer_forward.2} parent=39 // pred_check
        %p276 = pneg %p72
      $region46: #{encoder_layer_forward.2} parent=39 // pred_check_branch
        %278 = sbr.rel (%p276) target = $region48
      $region47: #{encoder_layer_forward.2} parent=39 // pred_region
        %p279 = scmp.lt.s32.totalorder %s21, 1
        %s280 = scalar_select %p279, %s21, 1
        %s281 = scalar_lea.vmem %s1, %s280
      $region48: #{encoder_layer_forward.2} parent=39 // pred_fallthru
        _
    $region40: #{encoder_layer_forward.2} parent=5 // pred_fallthru
      _
    %p282 = scmp.le.s32.totalorder 1, %s14
    %p283 = scmp.lt.s32.totalorder %s14, 3
    %p284 = pnand %p282, %p283
    %p285 = pneg %p284
    // Predicated region
    $region49: #{encoder_layer_forward.2} parent=5 // pred_check
      _
    $region50: #{encoder_layer_forward.2} parent=5 // pred_check_branch
      %287 = sbr.rel (%p284) target = $region52
    $region51: #{encoder_layer_forward.2} parent=5 // pred_region
      %s288 = ssub.s32 %s14, 1
      %p289 = scmp.lt.s32.totalorder %s23, 1
      %s290 = scalar_select %p289, %s23, 1
      %s291 = smul.addr %s290, 8
      %s292 = scalar_lea.vmem %s0, %s291
      %p293 = pneg %p52
      %p294 = pneg %p49
      %p295 = scmp.lt.s32.totalorder %s23, 1
      %s296 = scalar_select %p295, %s23, 1
      %s297 = scalar_lea.vmem %s1, %s296
      %p298 = pneg %p78
      %p299 = pneg %p75
      %p300 = pneg %p99
      %p301 = pneg %p96
      %p302 = pneg %p120
      %p303 = pneg %p117
      %p304 = pneg %p141
      %p305 = pneg %p138
      %p306 = pneg %p162
      %p307 = pneg %p159
      %p308 = pneg %p183
      %p309 = pneg %p180
      %p310 = pneg %p204
      %p311 = pneg %p201
      %p312 = pneg %p232
      %p313 = pneg %p229
      %p314 = scmp.lt.s32.totalorder %s23, 1
      %s315 = scalar_select %p314, %s23, 1
      %p316 = scmp.lt.s32.totalorder %s24, 0
      %s317 = scalar_select %p316, %s24, 0
      %s318 = sadd.s32 %s317, %s315
      %s319 = smul.addr %s318, 8
      %s320 = scalar_lea.vmem %s8, %s319
      %p321 = scmp.lt.s32.totalorder %s23, 1
      %s322 = scalar_select %p321, %s23, 1
      %s323 = smul.addr %s322, 8
      %s324 = scalar_lea.vmem %s0, %s323
      %p325 = scmp.lt.s32.totalorder %s23, 1
      %s326 = scalar_select %p325, %s23, 1
      %s327 = scalar_lea.vmem %s1, %s326
      %p328 = scmp.lt.s32.totalorder %s23, 1
      %s329 = scalar_select %p328, %s23, 1
      %p330 = scmp.lt.s32.totalorder %s24, 0
      %s331 = scalar_select %p330, %s24, 0
      %s332 = sadd.s32 %s331, %s329
      %s333 = smul.addr %s332, 8
      %s334 = scalar_lea.vmem %s8, %s333
      %p335 = scmp.eq.s32.totalorder %s24, 0
      // Predicated region
      $region53: #{encoder_layer_forward.2} parent=51 // pred_check
        %p336 = pneg %p335
      $region54: #{encoder_layer_forward.2} parent=51 // pred_check_branch
        %338 = sbr.rel (%p336) target = $region56
      $region55: #{encoder_layer_forward.2} parent=51 // pred_region
        %v339 = vld [vmem:[%s324] sm:$0xff]
        %vm340 = vcmask 261120
        %v341 = vsel %vm340, %v339, 0.0
        %342 = vadd.xlane.f32.xlu0 %v341
        %v343 = vpop.xlane.xlu0 %342
        %v344 = vrcp.pop 32.0
        %v345 = vmul.f32 %v343, %v344
        %v346 = vsub.f32 %v339, %v345
        %v347 = vmul.f32 %v346, %v346
        %v348 = vsel %vm340, %v347, 0.0
        %349 = vadd.xlane.f32.xlu0 %v348
        %v350 = vpop.xlane.xlu0 %349
        %v351 = vrcp.pop 31.0
        %v352 = vmul.f32 %v350, %v351
        %v353 = vld [vmem:[%s2] sm:$0x1]
        %v355 = vlaneseq
        %v356 = vshrl.u32 %v355, 7
        %v357 = vsub.s32 0, %v356
        %v358 = vrot.slane %v353, %v357
        %v360 = vmul.f32 %v358, %v346
        %v361 = vrsqrt.pop %v352
        %v362 = vmul.f32 %v352, %v361
        %vm363 = vcmp.eq.f32.partialorder %v352, inf
        %v364 = vsel %vm363, %v352, %v362
        %vm365 = vcmp.eq.f32.partialorder %v352, 0.0
        %v366 = vand.u32 %v352, 2147483648
        %v367 = vsel %vm365, %v366, %v364
        %v368 = vadd.f32 %v367, 1e-06
        %v369 = vrcp.pop %v368
        %v370 = vmul.f32 %v360, %v369
        %v371 = vld [vmem:[%s3] sm:$0x1]
        %v373 = vlaneseq
        %v374 = vshrl.u32 %v373, 7
        %v375 = vsub.s32 0, %v374
        %v376 = vrot.slane %v371, %v375
        %v378 = vadd.f32 %v370, %v376
        %v379 = vld [vmem:[%s4] sm:$0xff]
        %v380 = vld [vmem:[%s4 + $0x8] sm:$0xff]
        %v381 = vld [vmem:[%s4 + $0x10] sm:$0xff]
        %v382 = vld [vmem:[%s4 + $0x18] sm:$0xff]
        %v383 = vld [vmem:[%s5] sm:$0x1]
        %v385 = vlaneseq
        %v386 = vshrl.u32 %v385, 7
        %v387 = vsub.s32 0, %v386
        %v388 = vrot.slane %v383, %v387
        %v391 = vsel %vm340, %v378, 0
        %393 = vmatprep.subr.mxu0 0.0
        %394 = vmatpush1.msra.mxu0 %v379
        %395 = vmatprep.subr.mxu0 0.0
        %396 = vmatpush1.msra.mxu0 %v380
        %397 = vmatprep.subr.mxu0 0.0
        %398 = vmatpush1.msra.mxu0 %v381
        %399 = vmatprep.subr.mxu0 0.0
        %400 = vmatpush1.msra.mxu0 %v382
        %401 = vmatprep.subr.mxu0 0.0
        %402 = vmatpush1.msra.mxu0 0.0
        %403 = vmatprep.subr.mxu0 0.0
        %404 = vmatpush1.msra.mxu0 0.0
        %405 = vmatprep.subr.mxu0 0.0
        %406 = vmatpush1.msra.mxu0 0.0
        %407 = vmatprep.subr.mxu0 0.0
        %408 = vmatpush1.msra.mxu0 0.0
        %409 = vmatprep.subr.mxu0 0.0
        %410 = vmatpush1.msra.mxu0 0.0
        %411 = vmatprep.subr.mxu0 0.0
        %412 = vmatpush1.msra.mxu0 0.0
        %413 = vmatprep.subr.mxu0 0.0
        %414 = vmatpush1.msra.mxu0 0.0
        %415 = vmatprep.subr.mxu0 0.0
        %416 = vmatpush1.msra.mxu0 0.0
        %417 = vmatprep.subr.mxu0 0.0
        %418 = vmatpush1.msra.mxu0 0.0
        %419 = vmatprep.subr.mxu0 0.0
        %420 = vmatpush1.msra.mxu0 0.0
        %421 = vmatprep.subr.mxu0 0.0
        %422 = vmatpush1.msra.mxu0 0.0
        %423 = vmatprep.subr.mxu0 0.0
        %424 = vmatpush1.msra.mxu0 0.0
        %425 = vmatprep.subr.mxu0 0.0
        %426 = vmatpush1.msra.mxu0 0.0
        %427 = vmatprep.subr.mxu0 0.0
        %428 = vmatpush1.msra.mxu0 0.0
        %429 = vmatprep.subr.mxu0 0.0
        %430 = vmatpush1.msra.mxu0 0.0
        %431 = vmatprep.subr.mxu0 0.0
        %432 = vmatpush1.msra.mxu0 0.0
        %433 = vmatprep.subr.mxu0 0.0
        %434 = vmatpush1.msra.mxu0 0.0
        %435 = vmatprep.subr.mxu0 0.0
        %436 = vmatpush1.msra.mxu0 0.0
        %437 = vmatprep.subr.mxu0 0.0
        %438 = vmatpush1.msra.mxu0 0.0
        %439 = vmatprep.subr.mxu0 0.0
        %440 = vmatpush1.msra.mxu0 0.0
        %441 = vmatprep.subr.mxu0 0.0
        %442 = vmatpush1.msra.mxu0 0.0
        %443 = vmatprep.subr.mxu0 0.0
        %444 = vmatpush1.msra.mxu0 0.0
        %445 = vmatprep.subr.mxu0 0.0
        %446 = vmatpush1.msra.mxu0 0.0
        %447 = vmatprep.subr.mxu0 0.0
        %448 = vmatpush1.msra.mxu0 0.0
        %449 = vmatprep.subr.mxu0 0.0
        %450 = vmatpush1.msra.mxu0 0.0
        %451 = vmatprep.subr.mxu0 0.0
        %452 = vmatpush1.msra.mxu0 0.0
        %453 = vmatprep.subr.mxu0 0.0
        %454 = vmatpush1.msra.mxu0 0.0
        %455 = vmatprep.subr.mxu0 0.0
        %456 = vmatpush1.msra.mxu0 0.0
        %457 = vmatprep.mubr.f32.mxu0 0.0
        %458 = vmatmul.mubr.f32.gmra.mrb[0].mxu0 %v391
        %v459 = vpop.f32.mrb[0].mxu0
        %v460 = vadd.f32 %v388, %v459
        %v461 = vpop.f32.mrb[0].mxu0
        %462 = vdwg.mxu0
        %vm463 = vcmask 785408
        %464 = vst.msk [vmem:[#allocation2] sm:$0xff] %vm463, %v460
      $region56: #{encoder_layer_forward.2} parent=51 // pred_fallthru
        _
      %s465 = smul.u32 %s24, 8
      %v466 = vld [vmem:[%s327] sm:$0x1]
      %s467 = scalar_lea.vmem [#allocation2], %s465
      %v468 = vld [vmem:[%s467] sm:$0xff]
      %v469 = vld [vmem:[#allocation2] sm:$0xff]
      %v471 = vlaneseq
      %v472 = vshrl.u32 %v471, 7
      %v473 = vsub.s32 0, %v472
      %v474 = vrot.slane %v466, %v473
      %477 = vrot.lane.b32.xlu0 %v469, 96
      %v478 = vpop.permute.xlu0 %477
      %vm479 = vcmask 64512
      %v481 = vsel %vm479, %v468, 0
      %v483 = vsel %vm479, %v478, 0
      %485 = vmatprep.subr.mxu0 0.0
      %486 = vmatpush1.xpose.msra.mxu0 %v483
      %487 = vmatprep.subr.mxu0 0.0
      %488 = vmatpush1.xpose.msra.mxu0 0.0
      %489 = vmatprep.subr.mxu0 0.0
      %490 = vmatpush1.xpose.msra.mxu0 0.0
      %491 = vmatprep.subr.mxu0 0.0
      %492 = vmatpush1.xpose.msra.mxu0 0.0
      %493 = vmatprep.subr.mxu0 0.0
      %494 = vmatpush1.xpose.msra.mxu0 0.0
      %495 = vmatprep.subr.mxu0 0.0
      %496 = vmatpush1.xpose.msra.mxu0 0.0
      %497 = vmatprep.subr.mxu0 0.0
      %498 = vmatpush1.xpose.msra.mxu0 0.0
      %499 = vmatprep.subr.mxu0 0.0
      %500 = vmatpush1.xpose.msra.mxu0 0.0
      %501 = vmatprep.subr.mxu0 0.0
      %502 = vmatpush1.xpose.msra.mxu0 0.0
      %503 = vmatprep.subr.mxu0 0.0
      %504 = vmatpush1.xpose.msra.mxu0 0.0
      %505 = vmatprep.subr.mxu0 0.0
      %506 = vmatpush1.xpose.msra.mxu0 0.0
      %507 = vmatprep.subr.mxu0 0.0
      %508 = vmatpush1.xpose.msra.mxu0 0.0
      %509 = vmatprep.subr.mxu0 0.0
      %510 = vmatpush1.xpose.msra.mxu0 0.0
      %511 = vmatprep.subr.mxu0 0.0
      %512 = vmatpush1.xpose.msra.mxu0 0.0
      %513 = vmatprep.subr.mxu0 0.0
      %514 = vmatpush1.xpose.msra.mxu0 0.0
      %515 = vmatprep.subr.mxu0 0.0
      %516 = vmatpush1.xpose.msra.mxu0 0.0
      %517 = vmatprep.subr.mxu0 0.0
      %518 = vmatpush1.xpose.msra.mxu0 0.0
      %519 = vmatprep.subr.mxu0 0.0
      %520 = vmatpush1.xpose.msra.mxu0 0.0
      %521 = vmatprep.subr.mxu0 0.0
      %522 = vmatpush1.xpose.msra.mxu0 0.0
      %523 = vmatprep.subr.mxu0 0.0
      %524 = vmatpush1.xpose.msra.mxu0 0.0
      %525 = vmatprep.subr.mxu0 0.0
      %526 = vmatpush1.xpose.msra.mxu0 0.0
      %527 = vmatprep.subr.mxu0 0.0
      %528 = vmatpush1.xpose.msra.mxu0 0.0
      %529 = vmatprep.subr.mxu0 0.0
      %530 = vmatpush1.xpose.msra.mxu0 0.0
      %531 = vmatprep.subr.mxu0 0.0
      %532 = vmatpush1.xpose.msra.mxu0 0.0
      %533 = vmatprep.subr.mxu0 0.0
      %534 = vmatpush1.xpose.msra.mxu0 0.0
      %535 = vmatprep.subr.mxu0 0.0
      %536 = vmatpush1.xpose.msra.mxu0 0.0
      %537 = vmatprep.subr.mxu0 0.0
      %538 = vmatpush1.xpose.msra.mxu0 0.0
      %539 = vmatprep.subr.mxu0 0.0
      %540 = vmatpush1.xpose.msra.mxu0 0.0
      %541 = vmatprep.subr.mxu0 0.0
      %542 = vmatpush1.xpose.msra.mxu0 0.0
      %543 = vmatprep.subr.mxu0 0.0
      %544 = vmatpush1.xpose.msra.mxu0 0.0
      %545 = vmatprep.subr.mxu0 0.0
      %546 = vmatpush1.xpose.msra.mxu0 0.0
      %547 = vmatprep.subr.mxu0 0.0
      %548 = vmatpush1.xpose.msra.mxu0 0.0
      %549 = vmatprep.mubr.f32.mxu0 0.0
      %550 = vmatmul.mubr.f32.gmra.mrb[0].mxu0 %v481
      %v551 = vpop.f32.mrb[0].mxu0
      %v552 = vadd.f32 %v474, %v551
      %v553 = vpop.f32.mrb[0].mxu0
      %554 = vdwg.mxu0
      %v555 = vsel %vm479, %v552, -inf
      %556 = vmax.xlane.f32.xlu0 %v555
      %v557 = vpop.xlane.xlu0 %556
      %v558 = vsub.f32 %v552, %v557
      %v559 = vmul.f32 %v558, 1.442695
      %v560 = vpow.pop %v559
      %v561 = vsel %vm479, %v560, 0.0
      %562 = vadd.xlane.f32.xlu0 %v561
      %v563 = vpop.xlane.xlu0 %562
      %564 = vrot.lane.b32.xlu0 %v469, 64
      %v565 = vpop.permute.xlu0 %564
      %v568 = vsel %vm479, %v560, 0
      %570 = vmatprep.subr.mxu0 0.0
      %571 = vmatpush1.msra.mxu0 %v565
      %572 = vmatprep.subr.mxu0 0.0
      %573 = vmatpush1.msra.mxu0 0.0
      %574 = vmatprep.subr.mxu0 0.0
      %575 = vmatpush1.msra.mxu0 0.0
      %576 = vmatprep.subr.mxu0 0.0
      %577 = vmatpush1.msra.mxu0 0.0
      %578 = vmatprep.subr.mxu0 0.0
      %579 = vmatpush1.msra.mxu0 0.0
      %580 = vmatprep.subr.mxu0 0.0
      %581 = vmatpush1.msra.mxu0 0.0
      %582 = vmatprep.subr.mxu0 0.0
      %583 = vmatpush1.msra.mxu0 0.0
      %584 = vmatprep.subr.mxu0 0.0
      %585 = vmatpush1.msra.mxu0 0.0
      %586 = vmatprep.subr.mxu0 0.0
      %587 = vmatpush1.msra.mxu0 0.0
      %588 = vmatprep.subr.mxu0 0.0
      %589 = vmatpush1.msra.mxu0 0.0
      %590 = vmatprep.subr.mxu0 0.0
      %591 = vmatpush1.msra.mxu0 0.0
      %592 = vmatprep.subr.mxu0 0.0
      %593 = vmatpush1.msra.mxu0 0.0
      %594 = vmatprep.subr.mxu0 0.0
      %595 = vmatpush1.msra.mxu0 0.0
      %596 = vmatprep.subr.mxu0 0.0
      %597 = vmatpush1.msra.mxu0 0.0
      %598 = vmatprep.subr.mxu0 0.0
      %599 = vmatpush1.msra.mxu0 0.0
      %600 = vmatprep.subr.mxu0 0.0
      %601 = vmatpush1.msra.mxu0 0.0
      %602 = vmatprep.subr.mxu0 0.0
      %603 = vmatpush1.msra.mxu0 0.0
      %604 = vmatprep.subr.mxu0 0.0
      %605 = vmatpush1.msra.mxu0 0.0
      %606 = vmatprep.subr.mxu0 0.0
      %607 = vmatpush1.msra.mxu0 0.0
      %608 = vmatprep.subr.mxu0 0.0
      %609 = vmatpush1.msra.mxu0 0.0
      %610 = vmatprep.subr.mxu0 0.0
      %611 = vmatpush1.msra.mxu0 0.0
      %612 = vmatprep.subr.mxu0 0.0
      %613 = vmatpush1.msra.mxu0 0.0
      %614 = vmatprep.subr.mxu0 0.0
      %615 = vmatpush1.msra.mxu0 0.0
      %616 = vmatprep.subr.mxu0 0.0
      %617 = vmatpush1.msra.mxu0 0.0
      %618 = vmatprep.subr.mxu0 0.0
      %619 = vmatpush1.msra.mxu0 0.0
      %620 = vmatprep.subr.mxu0 0.0
      %621 = vmatpush1.msra.mxu0 0.0
      %622 = vmatprep.subr.mxu0 0.0
      %623 = vmatpush1.msra.mxu0 0.0
      %624 = vmatprep.subr.mxu0 0.0
      %625 = vmatpush1.msra.mxu0 0.0
      %626 = vmatprep.subr.mxu0 0.0
      %627 = vmatpush1.msra.mxu0 0.0
      %628 = vmatprep.subr.mxu0 0.0
      %629 = vmatpush1.msra.mxu0 0.0
      %630 = vmatprep.subr.mxu0 0.0
      %631 = vmatpush1.msra.mxu0 0.0
      %632 = vmatprep.subr.mxu0 0.0
      %633 = vmatpush1.msra.mxu0 0.0
      %634 = vmatprep.mubr.f32.mxu0 0.0
      %635 = vmatmul.mubr.f32.gmra.mrb[0].mxu0 %v568
      %v636 = vpop.f32.mrb[0].mxu0
      %v637 = vadd.f32 0.0, %v636
      %v638 = vpop.f32.mrb[0].mxu0
      %639 = vdwg.mxu0
      %v640 = vrcp.pop %v563
      %v641 = vmul.f32 %v637, %v640
      %642 = vst.msk [vmem:[#allocation3] sm:$0xff] %vm479, %v641
      %v643 = vld [vmem:[%s467] sm:$0xff]
      %v644 = vld [vmem:[#allocation2] sm:$0xff]
      %646 = vrot.lane.b32.xlu0 %v643, 120
      %v647 = vpop.permute.xlu0 %646
      %649 = vrot.lane.b32.xlu0 %v644, 88
      %v650 = vpop.permute.xlu0 %649
      %v651 = vsel %vm479, %v647, 0
      %v653 = vsel %vm479, %v650, 0
      %655 = vmatprep.subr.mxu0 0.0
      %656 = vmatpush1.xpose.msra.mxu0 %v653
      %657 = vmatprep.subr.mxu0 0.0
      %658 = vmatpush1.xpose.msra.mxu0 0.0
      %659 = vmatprep.subr.mxu0 0.0
      %660 = vmatpush1.xpose.msra.mxu0 0.0
      %661 = vmatprep.subr.mxu0 0.0
      %662 = vmatpush1.xpose.msra.mxu0 0.0
      %663 = vmatprep.subr.mxu0 0.0
      %664 = vmatpush1.xpose.msra.mxu0 0.0
      %665 = vmatprep.subr.mxu0 0.0
      %666 = vmatpush1.xpose.msra.mxu0 0.0
      %667 = vmatprep.subr.mxu0 0.0
      %668 = vmatpush1.xpose.msra.mxu0 0.0
      %669 = vmatprep.subr.mxu0 0.0
      %670 = vmatpush1.xpose.msra.mxu0 0.0
      %671 = vmatprep.subr.mxu0 0.0
      %672 = vmatpush1.xpose.msra.mxu0 0.0
      %673 = vmatprep.subr.mxu0 0.0
      %674 = vmatpush1.xpose.msra.mxu0 0.0
      %675 = vmatprep.subr.mxu0 0.0
      %676 = vmatpush1.xpose.msra.mxu0 0.0
      %677 = vmatprep.subr.mxu0 0.0
      %678 = vmatpush1.xpose.msra.mxu0 0.0
      %679 = vmatprep.subr.mxu0 0.0
      %680 = vmatpush1.xpose.msra.mxu0 0.0
      %681 = vmatprep.subr.mxu0 0.0
      %682 = vmatpush1.xpose.msra.mxu0 0.0
      %683 = vmatprep.subr.mxu0 0.0
      %684 = vmatpush1.xpose.msra.mxu0 0.0
      %685 = vmatprep.subr.mxu0 0.0
      %686 = vmatpush1.xpose.msra.mxu0 0.0
      %687 = vmatprep.subr.mxu0 0.0
      %688 = vmatpush1.xpose.msra.mxu0 0.0
      %689 = vmatprep.subr.mxu0 0.0
      %690 = vmatpush1.xpose.msra.mxu0 0.0
      %691 = vmatprep.subr.mxu0 0.0
      %692 = vmatpush1.xpose.msra.mxu0 0.0
      %693 = vmatprep.subr.mxu0 0.0
      %694 = vmatpush1.xpose.msra.mxu0 0.0
      %695 = vmatprep.subr.mxu0 0.0
      %696 = vmatpush1.xpose.msra.mxu0 0.0
      %697 = vmatprep.subr.mxu0 0.0
      %698 = vmatpush1.xpose.msra.mxu0 0.0
      %699 = vmatprep.subr.mxu0 0.0
      %700 = vmatpush1.xpose.msra.mxu0 0.0
      %701 = vmatprep.subr.mxu0 0.0
      %702 = vmatpush1.xpose.msra.mxu0 0.0
      %703 = vmatprep.subr.mxu0 0.0
      %704 = vmatpush1.xpose.msra.mxu0 0.0
      %705 = vmatprep.subr.mxu0 0.0
      %706 = vmatpush1.xpose.msra.mxu0 0.0
      %707 = vmatprep.subr.mxu0 0.0
      %708 = vmatpush1.xpose.msra.mxu0 0.0
      %709 = vmatprep.subr.mxu0 0.0
      %710 = vmatpush1.xpose.msra.mxu0 0.0
      %711 = vmatprep.subr.mxu0 0.0
      %712 = vmatpush1.xpose.msra.mxu0 0.0
      %713 = vmatprep.subr.mxu0 0.0
      %714 = vmatpush1.xpose.msra.mxu0 0.0
      %715 = vmatprep.subr.mxu0 0.0
      %716 = vmatpush1.xpose.msra.mxu0 0.0
      %717 = vmatprep.subr.mxu0 0.0
      %718 = vmatpush1.xpose.msra.mxu0 0.0
      %719 = vmatprep.mubr.f32.mxu0 0.0
      %720 = vmatmul.mubr.f32.gmra.mrb[0].mxu0 %v651
      %v721 = vpop.f32.mrb[0].mxu0
      %v722 = vadd.f32 %v474, %v721
      %v723 = vpop.f32.mrb[0].mxu0
      %724 = vdwg.mxu0
      %v725 = vsel %vm479, %v722, -inf
      %726 = vmax.xlane.f32.xlu0 %v725
      %v727 = vpop.xlane.xlu0 %726
      %v728 = vsub.f32 %v722, %v727
      %v729 = vmul.f32 %v728, 1.442695
      %v730 = vpow.pop %v729
      %v731 = vsel %vm479, %v730, 0.0
      %732 = vadd.xlane.f32.xlu0 %v731
      %v733 = vpop.xlane.xlu0 %732
      %734 = vrot.lane.b32.xlu0 %v644, 56
      %v735 = vpop.permute.xlu0 %734
      %v738 = vsel %vm479, %v730, 0
      %740 = vmatprep.subr.mxu0 0.0
      %741 = vmatpush1.msra.mxu0 %v735
      %742 = vmatprep.subr.mxu0 0.0
      %743 = vmatpush1.msra.mxu0 0.0
      %744 = vmatprep.subr.mxu0 0.0
      %745 = vmatpush1.msra.mxu0 0.0
      %746 = vmatprep.subr.mxu0 0.0
      %747 = vmatpush1.msra.mxu0 0.0
      %748 = vmatprep.subr.mxu0 0.0
      %749 = vmatpush1.msra.mxu0 0.0
      %750 = vmatprep.subr.mxu0 0.0
      %751 = vmatpush1.msra.mxu0 0.0
      %752 = vmatprep.subr.mxu0 0.0
      %753 = vmatpush1.msra.mxu0 0.0
      %754 = vmatprep.subr.mxu0 0.0
      %755 = vmatpush1.msra.mxu0 0.0
      %756 = vmatprep.subr.mxu0 0.0
      %757 = vmatpush1.msra.mxu0 0.0
      %758 = vmatprep.subr.mxu0 0.0
      %759 = vmatpush1.msra.mxu0 0.0
      %760 = vmatprep.subr.mxu0 0.0
      %761 = vmatpush1.msra.mxu0 0.0
      %762 = vmatprep.subr.mxu0 0.0
      %763 = vmatpush1.msra.mxu0 0.0
      %764 = vmatprep.subr.mxu0 0.0
      %765 = vmatpush1.msra.mxu0 0.0
      %766 = vmatprep.subr.mxu0 0.0
      %767 = vmatpush1.msra.mxu0 0.0
      %768 = vmatprep.subr.mxu0 0.0
      %769 = vmatpush1.msra.mxu0 0.0
      %770 = vmatprep.subr.mxu0 0.0
      %771 = vmatpush1.msra.mxu0 0.0
      %772 = vmatprep.subr.mxu0 0.0
      %773 = vmatpush1.msra.mxu0 0.0
      %774 = vmatprep.subr.mxu0 0.0
      %775 = vmatpush1.msra.mxu0 0.0
      %776 = vmatprep.subr.mxu0 0.0
      %777 = vmatpush1.msra.mxu0 0.0
      %778 = vmatprep.subr.mxu0 0.0
      %779 = vmatpush1.msra.mxu0 0.0
      %780 = vmatprep.subr.mxu0 0.0
      %781 = vmatpush1.msra.mxu0 0.0
      %782 = vmatprep.subr.mxu0 0.0
      %783 = vmatpush1.msra.mxu0 0.0
      %784 = vmatprep.subr.mxu0 0.0
      %785 = vmatpush1.msra.mxu0 0.0
      %786 = vmatprep.subr.mxu0 0.0
      %787 = vmatpush1.msra.mxu0 0.0
      %788 = vmatprep.subr.mxu0 0.0
      %789 = vmatpush1.msra.mxu0 0.0
      %790 = vmatprep.subr.mxu0 0.0
      %791 = vmatpush1.msra.mxu0 0.0
      %792 = vmatprep.subr.mxu0 0.0
      %793 = vmatpush1.msra.mxu0 0.0
      %794 = vmatprep.subr.mxu0 0.0
      %795 = vmatpush1.msra.mxu0 0.0
      %796 = vmatprep.subr.mxu0 0.0
      %797 = vmatpush1.msra.mxu0 0.0
      %798 = vmatprep.subr.mxu0 0.0
      %799 = vmatpush1.msra.mxu0 0.0
      %800 = vmatprep.subr.mxu0 0.0
      %801 = vmatpush1.msra.mxu0 0.0
      %802 = vmatprep.subr.mxu0 0.0
      %803 = vmatpush1.msra.mxu0 0.0
      %804 = vmatprep.mubr.f32.mxu0 0.0
      %805 = vmatmul.mubr.f32.gmra.mrb[0].mxu0 %v738
      %v806 = vpop.f32.mrb[0].mxu0
      %v807 = vadd.f32 0.0, %v806
      %v808 = vpop.f32.mrb[0].mxu0
      %809 = vdwg.mxu0
      %v810 = vrcp.pop %v733
      %v811 = vmul.f32 %v807, %v810
      %813 = vrot.lane.b32.xlu0 %v811, 8
      %v814 = vpop.permute.xlu0 %813
      %vm816 = vcmask 130112
      %817 = vst.msk [vmem:[#allocation3] sm:$0xff] %vm816, %v814
      %v818 = vld [vmem:[%s467] sm:$0xff]
      %v819 = vld [vmem:[#allocation2] sm:$0xff]
      %821 = vrot.lane.b32.xlu0 %v818, 112
      %v822 = vpop.permute.xlu0 %821
      %824 = vrot.lane.b32.xlu0 %v819, 80
      %v825 = vpop.permute.xlu0 %824
      %v826 = vsel %vm479, %v822, 0
      %v828 = vsel %vm479, %v825, 0
      %830 = vmatprep.subr.mxu0 0.0
      %831 = vmatpush1.xpose.msra.mxu0 %v828
      %832 = vmatprep.subr.mxu0 0.0
      %833 = vmatpush1.xpose.msra.mxu0 0.0
      %834 = vmatprep.subr.mxu0 0.0
      %835 = vmatpush1.xpose.msra.mxu0 0.0
      %836 = vmatprep.subr.mxu0 0.0
      %837 = vmatpush1.xpose.msra.mxu0 0.0
      %838 = vmatprep.subr.mxu0 0.0
      %839 = vmatpush1.xpose.msra.mxu0 0.0
      %840 = vmatprep.subr.mxu0 0.0
      %841 = vmatpush1.xpose.msra.mxu0 0.0
      %842 = vmatprep.subr.mxu0 0.0
      %843 = vmatpush1.xpose.msra.mxu0 0.0
      %844 = vmatprep.subr.mxu0 0.0
      %845 = vmatpush1.xpose.msra.mxu0 0.0
      %846 = vmatprep.subr.mxu0 0.0
      %847 = vmatpush1.xpose.msra.mxu0 0.0
      %848 = vmatprep.subr.mxu0 0.0
      %849 = vmatpush1.xpose.msra.mxu0 0.0
      %850 = vmatprep.subr.mxu0 0.0
      %851 = vmatpush1.xpose.msra.mxu0 0.0
      %852 = vmatprep.subr.mxu0 0.0
      %853 = vmatpush1.xpose.msra.mxu0 0.0
      %854 = vmatprep.subr.mxu0 0.0
      %855 = vmatpush1.xpose.msra.mxu0 0.0
      %856 = vmatprep.subr.mxu0 0.0
      %857 = vmatpush1.xpose.msra.mxu0 0.0
      %858 = vmatprep.subr.mxu0 0.0
      %859 = vmatpush1.xpose.msra.mxu0 0.0
      %860 = vmatprep.subr.mxu0 0.0
      %861 = vmatpush1.xpose.msra.mxu0 0.0
      %862 = vmatprep.subr.mxu0 0.0
      %863 = vmatpush1.xpose.msra.mxu0 0.0
      %864 = vmatprep.subr.mxu0 0.0
      %865 = vmatpush1.xpose.msra.mxu0 0.0
      %866 = vmatprep.subr.mxu0 0.0
      %867 = vmatpush1.xpose.msra.mxu0 0.0
      %868 = vmatprep.subr.mxu0 0.0
      %869 = vmatpush1.xpose.msra.mxu0 0.0
      %870 = vmatprep.subr.mxu0 0.0
      %871 = vmatpush1.xpose.msra.mxu0 0.0
      %872 = vmatprep.subr.mxu0 0.0
      %873 = vmatpush1.xpose.msra.mxu0 0.0
      %874 = vmatprep.subr.mxu0 0.0
      %875 = vmatpush1.xpose.msra.mxu0 0.0
      %876 = vmatprep.subr.mxu0 0.0
      %877 = vmatpush1.xpose.msra.mxu0 0.0
      %878 = vmatprep.subr.mxu0 0.0
      %879 = vmatpush1.xpose.msra.mxu0 0.0
      %880 = vmatprep.subr.mxu0 0.0
      %881 = vmatpush1.xpose.msra.mxu0 0.0
      %882 = vmatprep.subr.mxu0 0.0
      %883 = vmatpush1.xpose.msra.mxu0 0.0
      %884 = vmatprep.subr.mxu0 0.0
      %885 = vmatpush1.xpose.msra.mxu0 0.0
      %886 = vmatprep.subr.mxu0 0.0
      %887 = vmatpush1.xpose.msra.mxu0 0.0
      %888 = vmatprep.subr.mxu0 0.0
      %889 = vmatpush1.xpose.msra.mxu0 0.0
      %890 = vmatprep.subr.mxu0 0.0
      %891 = vmatpush1.xpose.msra.mxu0 0.0
      %892 = vmatprep.subr.mxu0 0.0
      %893 = vmatpush1.xpose.msra.mxu0 0.0
      %894 = vmatprep.mubr.f32.mxu0 0.0
      %895 = vmatmul.mubr.f32.gmra.mrb[0].mxu0 %v826
      %v896 = vpop.f32.mrb[0].mxu0
      %v897 = vadd.f32 %v474, %v896
      %v898 = vpop.f32.mrb[0].mxu0
      %899 = vdwg.mxu0
      %v900 = vsel %vm479, %v897, -inf
      %901 = vmax.xlane.f32.xlu0 %v900
      %v902 = vpop.xlane.xlu0 %901
      %v903 = vsub.f32 %v897, %v902
      %v904 = vmul.f32 %v903, 1.442695
      %v905 = vpow.pop %v904
      %v906 = vsel %vm479, %v905, 0.0
      %907 = vadd.xlane.f32.xlu0 %v906
      %v908 = vpop.xlane.xlu0 %907
      %909 = vrot.lane.b32.xlu0 %v819, 48
      %v910 = vpop.permute.xlu0 %909
      %v913 = vsel %vm479, %v905, 0
      %915 = vmatprep.subr.mxu0 0.0
      %916 = vmatpush1.msra.mxu0 %v910
      %917 = vmatprep.subr.mxu0 0.0
      %918 = vmatpush1.msra.mxu0 0.0
      %919 = vmatprep.subr.mxu0 0.0
      %920 = vmatpush1.msra.mxu0 0.0
      %921 = vmatprep.subr.mxu0 0.0
      %922 = vmatpush1.msra.mxu0 0.0
      %923 = vmatprep.subr.mxu0 0.0
      %924 = vmatpush1.msra.mxu0 0.0
      %925 = vmatprep.subr.mxu0 0.0
      %926 = vmatpush1.msra.mxu0 0.0
      %927 = vmatprep.subr.mxu0 0.0
      %928 = vmatpush1.msra.mxu0 0.0
      %929 = vmatprep.subr.mxu0 0.0
      %930 = vmatpush1.msra.mxu0 0.0
      %931 = vmatprep.subr.mxu0 0.0
      %932 = vmatpush1.msra.mxu0 0.0
      %933 = vmatprep.subr.mxu0 0.0
      %934 = vmatpush1.msra.mxu0 0.0
      %935 = vmatprep.subr.mxu0 0.0
      %936 = vmatpush1.msra.mxu0 0.0
      %937 = vmatprep.subr.mxu0 0.0
      %938 = vmatpush1.msra.mxu0 0.0
      %939 = vmatprep.subr.mxu0 0.0
      %940 = vmatpush1.msra.mxu0 0.0
      %941 = vmatprep.subr.mxu0 0.0
      %942 = vmatpush1.msra.mxu0 0.0
      %943 = vmatprep.subr.mxu0 0.0
      %944 = vmatpush1.msra.mxu0 0.0
      %945 = vmatprep.subr.mxu0 0.0
      %946 = vmatpush1.msra.mxu0 0.0
      %947 = vmatprep.subr.mxu0 0.0
      %948 = vmatpush1.msra.mxu0 0.0
      %949 = vmatprep.subr.mxu0 0.0
      %950 = vmatpush1.msra.mxu0 0.0
      %951 = vmatprep.subr.mxu0 0.0
      %952 = vmatpush1.msra.mxu0 0.0
      %953 = vmatprep.subr.mxu0 0.0
      %954 = vmatpush1.msra.mxu0 0.0
      %955 = vmatprep.subr.mxu0 0.0
      %956 = vmatpush1.msra.mxu0 0.0
      %957 = vmatprep.subr.mxu0 0.0
      %958 = vmatpush1.msra.mxu0 0.0
      %959 = vmatprep.subr.mxu0 0.0
      %960 = vmatpush1.msra.mxu0 0.0
      %961 = vmatprep.subr.mxu0 0.0
      %962 = vmatpush1.msra.mxu0 0.0
      %963 = vmatprep.subr.mxu0 0.0
      %964 = vmatpush1.msra.mxu0 0.0
      %965 = vmatprep.subr.mxu0 0.0
      %966 = vmatpush1.msra.mxu0 0.0
      %967 = vmatprep.subr.mxu0 0.0
      %968 = vmatpush1.msra.mxu0 0.0
      %969 = vmatprep.subr.mxu0 0.0
      %970 = vmatpush1.msra.mxu0 0.0
      %971 = vmatprep.subr.mxu0 0.0
      %972 = vmatpush1.msra.mxu0 0.0
      %973 = vmatprep.subr.mxu0 0.0
      %974 = vmatpush1.msra.mxu0 0.0
      %975 = vmatprep.subr.mxu0 0.0
      %976 = vmatpush1.msra.mxu0 0.0
      %977 = vmatprep.subr.mxu0 0.0
      %978 = vmatpush1.msra.mxu0 0.0
      %979 = vmatprep.mubr.f32.mxu0 0.0
      %980 = vmatmul.mubr.f32.gmra.mrb[0].mxu0 %v913
      %v981 = vpop.f32.mrb[0].mxu0
      %v982 = vadd.f32 0.0, %v981
      %v983 = vpop.f32.mrb[0].mxu0
      %984 = vdwg.mxu0
      %v985 = vrcp.pop %v908
      %v986 = vmul.f32 %v982, %v985
      %988 = vrot.lane.b32.xlu0 %v986, 16
      %v989 = vpop.permute.xlu0 %988
      %vm991 = vcmask 195712
      %992 = vst.msk [vmem:[#allocation3] sm:$0xff] %vm991, %v989
      %v993 = vld [vmem:[%s467] sm:$0xff]
      %v994 = vld [vmem:[#allocation2] sm:$0xff]
      %996 = vrot.lane.b32.xlu0 %v993, 104
      %v997 = vpop.permute.xlu0 %996
      %999 = vrot.lane.b32.xlu0 %v994, 72
      %v1000 = vpop.permute.xlu0 %999
      %v1001 = vsel %vm479, %v997, 0
      %v1003 = vsel %vm479, %v1000, 0
      %1005 = vmatprep.subr.mxu0 0.0
      %1006 = vmatpush1.xpose.msra.mxu0 %v1003
      %1007 = vmatprep.subr.mxu0 0.0
      %1008 = vmatpush1.xpose.msra.mxu0 0.0
      %1009 = vmatprep.subr.mxu0 0.0
      %1010 = vmatpush1.xpose.msra.mxu0 0.0
      %1011 = vmatprep.subr.mxu0 0.0
      %1012 = vmatpush1.xpose.msra.mxu0 0.0
      %1013 = vmatprep.subr.mxu0 0.0
      %1014 = vmatpush1.xpose.msra.mxu0 0.0
      %1015 = vmatprep.subr.mxu0 0.0
      %1016 = vmatpush1.xpose.msra.mxu0 0.0
      %1017 = vmatprep.subr.mxu0 0.0
      %1018 = vmatpush1.xpose.msra.mxu0 0.0
      %1019 = vmatprep.subr.mxu0 0.0
      %1020 = vmatpush1.xpose.msra.mxu0 0.0
      %1021 = vmatprep.subr.mxu0 0.0
      %1022 = vmatpush1.xpose.msra.mxu0 0.0
      %1023 = vmatprep.subr.mxu0 0.0
      %1024 = vmatpush1.xpose.msra.mxu0 0.0
      %1025 = vmatprep.subr.mxu0 0.0
      %1026 = vmatpush1.xpose.msra.mxu0 0.0
      %1027 = vmatprep.subr.mxu0 0.0
      %1028 = vmatpush1.xpose.msra.mxu0 0.0
      %1029 = vmatprep.subr.mxu0 0.0
      %1030 = vmatpush1.xpose.msra.mxu0 0.0
      %1031 = vmatprep.subr.mxu0 0.0
      %1032 = vmatpush1.xpose.msra.mxu0 0.0
      %1033 = vmatprep.subr.mxu0 0.0
      %1034 = vmatpush1.xpose.msra.mxu0 0.0
      %1035 = vmatprep.subr.mxu0 0.0
      %1036 = vmatpush1.xpose.msra.mxu0 0.0
      %1037 = vmatprep.subr.mxu0 0.0
      %1038 = vmatpush1.xpose.msra.mxu0 0.0
      %1039 = vmatprep.subr.mxu0 0.0
      %1040 = vmatpush1.xpose.msra.mxu0 0.0
      %1041 = vmatprep.subr.mxu0 0.0
      %1042 = vmatpush1.xpose.msra.mxu0 0.0
      %1043 = vmatprep.subr.mxu0 0.0
      %1044 = vmatpush1.xpose.msra.mxu0 0.0
      %1045 = vmatprep.subr.mxu0 0.0
      %1046 = vmatpush1.xpose.msra.mxu0 0.0
      %1047 = vmatprep.subr.mxu0 0.0
      %1048 = vmatpush1.xpose.msra.mxu0 0.0
      %1049 = vmatprep.subr.mxu0 0.0
      %1050 = vmatpush1.xpose.msra.mxu0 0.0
      %1051 = vmatprep.subr.mxu0 0.0
      %1052 = vmatpush1.xpose.msra.mxu0 0.0
      %1053 = vmatprep.subr.mxu0 0.0
      %1054 = vmatpush1.xpose.msra.mxu0 0.0
      %1055 = vmatprep.subr.mxu0 0.0
      %1056 = vmatpush1.xpose.msra.mxu0 0.0
      %1057 = vmatprep.subr.mxu0 0.0
      %1058 = vmatpush1.xpose.msra.mxu0 0.0
      %1059 = vmatprep.subr.mxu0 0.0
      %1060 = vmatpush1.xpose.msra.mxu0 0.0
      %1061 = vmatprep.subr.mxu0 0.0
      %1062 = vmatpush1.xpose.msra.mxu0 0.0
      %1063 = vmatprep.subr.mxu0 0.0
      %1064 = vmatpush1.xpose.msra.mxu0 0.0
      %1065 = vmatprep.subr.mxu0 0.0
      %1066 = vmatpush1.xpose.msra.mxu0 0.0
      %1067 = vmatprep.subr.mxu0 0.0
      %1068 = vmatpush1.xpose.msra.mxu0 0.0
      %1069 = vmatprep.mubr.f32.mxu0 0.0
      %1070 = vmatmul.mubr.f32.gmra.mrb[0].mxu0 %v1001
      %v1071 = vpop.f32.mrb[0].mxu0
      %v1072 = vadd.f32 %v474, %v1071
      %v1073 = vpop.f32.mrb[0].mxu0
      %1074 = vdwg.mxu0
      %v1075 = vsel %vm479, %v1072, -inf
      %1076 = vmax.xlane.f32.xlu0 %v1075
      %v1077 = vpop.xlane.xlu0 %1076
      %v1078 = vsub.f32 %v1072, %v1077
      %v1079 = vmul.f32 %v1078, 1.442695
      %v1080 = vpow.pop %v1079
      %v1081 = vsel %vm479, %v1080, 0.0
      %1082 = vadd.xlane.f32.xlu0 %v1081
      %v1083 = vpop.xlane.xlu0 %1082
      %1084 = vrot.lane.b32.xlu0 %v994, 40
      %v1085 = vpop.permute.xlu0 %1084
      %v1088 = vsel %vm479, %v1080, 0
      %1090 = vmatprep.subr.mxu0 0.0
      %1091 = vmatpush1.msra.mxu0 %v1085
      %1092 = vmatprep.subr.mxu0 0.0
      %1093 = vmatpush1.msra.mxu0 0.0
      %1094 = vmatprep.subr.mxu0 0.0
      %1095 = vmatpush1.msra.mxu0 0.0
      %1096 = vmatprep.subr.mxu0 0.0
      %1097 = vmatpush1.msra.mxu0 0.0
      %1098 = vmatprep.subr.mxu0 0.0
      %1099 = vmatpush1.msra.mxu0 0.0
      %1100 = vmatprep.subr.mxu0 0.0
      %1101 = vmatpush1.msra.mxu0 0.0
      %1102 = vmatprep.subr.mxu0 0.0
      %1103 = vmatpush1.msra.mxu0 0.0
      %1104 = vmatprep.subr.mxu0 0.0
      %1105 = vmatpush1.msra.mxu0 0.0
      %1106 = vmatprep.subr.mxu0 0.0
      %1107 = vmatpush1.msra.mxu0 0.0
      %1108 = vmatprep.subr.mxu0 0.0
      %1109 = vmatpush1.msra.mxu0 0.0
      %1110 = vmatprep.subr.mxu0 0.0
      %1111 = vmatpush1.msra.mxu0 0.0
      %1112 = vmatprep.subr.mxu0 0.0
      %1113 = vmatpush1.msra.mxu0 0.0
      %1114 = vmatprep.subr.mxu0 0.0
      %1115 = vmatpush1.msra.mxu0 0.0
      %1116 = vmatprep.subr.mxu0 0.0
      %1117 = vmatpush1.msra.mxu0 0.0
      %1118 = vmatprep.subr.mxu0 0.0
      %1119 = vmatpush1.msra.mxu0 0.0
      %1120 = vmatprep.subr.mxu0 0.0
      %1121 = vmatpush1.msra.mxu0 0.0
      %1122 = vmatprep.subr.mxu0 0.0
      %1123 = vmatpush1.msra.mxu0 0.0
      %1124 = vmatprep.subr.mxu0 0.0
      %1125 = vmatpush1.msra.mxu0 0.0
      %1126 = vmatprep.subr.mxu0 0.0
      %1127 = vmatpush1.msra.mxu0 0.0
      %1128 = vmatprep.subr.mxu0 0.0
      %1129 = vmatpush1.msra.mxu0 0.0
      %1130 = vmatprep.subr.mxu0 0.0
      %1131 = vmatpush1.msra.mxu0 0.0
      %1132 = vmatprep.subr.mxu0 0.0
      %1133 = vmatpush1.msra.mxu0 0.0
      %1134 = vmatprep.subr.mxu0 0.0
      %1135 = vmatpush1.msra.mxu0 0.0
      %1136 = vmatprep.subr.mxu0 0.0
      %1137 = vmatpush1.msra.mxu0 0.0
      %1138 = vmatprep.subr.mxu0 0.0
      %1139 = vmatpush1.msra.mxu0 0.0
      %1140 = vmatprep.subr.mxu0 0.0
      %1141 = vmatpush1.msra.mxu0 0.0
      %1142 = vmatprep.subr.mxu0 0.0
      %1143 = vmatpush1.msra.mxu0 0.0
      %1144 = vmatprep.subr.mxu0 0.0
      %1145 = vmatpush1.msra.mxu0 0.0
      %1146 = vmatprep.subr.mxu0 0.0
      %1147 = vmatpush1.msra.mxu0 0.0
      %1148 = vmatprep.subr.mxu0 0.0
      %1149 = vmatpush1.msra.mxu0 0.0
      %1150 = vmatprep.subr.mxu0 0.0
      %1151 = vmatpush1.msra.mxu0 0.0
      %1152 = vmatprep.subr.mxu0 0.0
      %1153 = vmatpush1.msra.mxu0 0.0
      %1154 = vmatprep.mubr.f32.mxu0 0.0
      %1155 = vmatmul.mubr.f32.gmra.mrb[0].mxu0 %v1088
      %v1156 = vpop.f32.mrb[0].mxu0
      %v1157 = vadd.f32 0.0, %v1156
      %v1158 = vpop.f32.mrb[0].mxu0
      %1159 = vdwg.mxu0
      %v1160 = vrcp.pop %v1083
      %v1161 = vmul.f32 %v1157, %v1160
      %1163 = vrot.lane.b32.xlu0 %v1161, 24
      %v1164 = vpop.permute.xlu0 %1163
      %vm1166 = vcmask 261312
      %1167 = vst.msk [vmem:[#allocation3] sm:$0xff] %vm1166, %v1164
      %v1168 = vld [vmem:[#allocation3] sm:$0xff]
      %v1169 = vld [vmem:[%s6] sm:$0xff]
      %v1170 = vld [vmem:[%s6 + $0x8] sm:$0xff]
      %v1171 = vld [vmem:[%s6 + $0x10] sm:$0xff]
      %v1172 = vld [vmem:[%s6 + $0x18] sm:$0xff]
      %v1173 = vld [vmem:[%s7] sm:$0x1]
      %v1175 = vlaneseq
      %v1176 = vshrl.u32 %v1175, 7
      %v1177 = vsub.s32 0, %v1176
      %v1178 = vrot.slane %v1173, %v1177
      %vm1180 = vcmask 261120
      %v1182 = vsel %vm1180, %v1168, 0
      %1184 = vmatprep.subr.mxu0 0.0
      %1185 = vmatpush1.msra.mxu0 %v1169
      %1186 = vmatprep.subr.mxu0 0.0
      %1187 = vmatpush1.msra.mxu0 %v1170
      %1188 = vmatprep.subr.mxu0 0.0
      %1189 = vmatpush1.msra.mxu0 %v1171
      %1190 = vmatprep.subr.mxu0 0.0
      %1191 = vmatpush1.msra.mxu0 %v1172
      %1192 = vmatprep.subr.mxu0 0.0
      %1193 = vmatpush1.msra.mxu0 0.0
      %1194 = vmatprep.subr.mxu0 0.0
      %1195 = vmatpush1.msra.mxu0 0.0
      %1196 = vmatprep.subr.mxu0 0.0
      %1197 = vmatpush1.msra.mxu0 0.0
      %1198 = vmatprep.subr.mxu0 0.0
      %1199 = vmatpush1.msra.mxu0 0.0
      %1200 = vmatprep.subr.mxu0 0.0
      %1201 = vmatpush1.msra.mxu0 0.0
      %1202 = vmatprep.subr.mxu0 0.0
      %1203 = vmatpush1.msra.mxu0 0.0
      %1204 = vmatprep.subr.mxu0 0.0
      %1205 = vmatpush1.msra.mxu0 0.0
      %1206 = vmatprep.subr.mxu0 0.0
      %1207 = vmatpush1.msra.mxu0 0.0
      %1208 = vmatprep.subr.mxu0 0.0
      %1209 = vmatpush1.msra.mxu0 0.0
      %1210 = vmatprep.subr.mxu0 0.0
      %1211 = vmatpush1.msra.mxu0 0.0
      %1212 = vmatprep.subr.mxu0 0.0
      %1213 = vmatpush1.msra.mxu0 0.0
      %1214 = vmatprep.subr.mxu0 0.0
      %1215 = vmatpush1.msra.mxu0 0.0
      %1216 = vmatprep.subr.mxu0 0.0
      %1217 = vmatpush1.msra.mxu0 0.0
      %1218 = vmatprep.subr.mxu0 0.0
      %1219 = vmatpush1.msra.mxu0 0.0
      %1220 = vmatprep.subr.mxu0 0.0
      %1221 = vmatpush1.msra.mxu0 0.0
      %1222 = vmatprep.subr.mxu0 0.0
      %1223 = vmatpush1.msra.mxu0 0.0
      %1224 = vmatprep.subr.mxu0 0.0
      %1225 = vmatpush1.msra.mxu0 0.0
      %1226 = vmatprep.subr.mxu0 0.0
      %1227 = vmatpush1.msra.mxu0 0.0
      %1228 = vmatprep.subr.mxu0 0.0
      %1229 = vmatpush1.msra.mxu0 0.0
      %1230 = vmatprep.subr.mxu0 0.0
      %1231 = vmatpush1.msra.mxu0 0.0
      %1232 = vmatprep.subr.mxu0 0.0
      %1233 = vmatpush1.msra.mxu0 0.0
      %1234 = vmatprep.subr.mxu0 0.0
      %1235 = vmatpush1.msra.mxu0 0.0
      %1236 = vmatprep.subr.mxu0 0.0
      %1237 = vmatpush1.msra.mxu0 0.0
      %1238 = vmatprep.subr.mxu0 0.0
      %1239 = vmatpush1.msra.mxu0 0.0
      %1240 = vmatprep.subr.mxu0 0.0
      %1241 = vmatpush1.msra.mxu0 0.0
      %1242 = vmatprep.subr.mxu0 0.0
      %1243 = vmatpush1.msra.mxu0 0.0
      %1244 = vmatprep.subr.mxu0 0.0
      %1245 = vmatpush1.msra.mxu0 0.0
      %1246 = vmatprep.subr.mxu0 0.0
      %1247 = vmatpush1.msra.mxu0 0.0
      %1248 = vmatprep.mubr.f32.mxu0 0.0
      %1249 = vmatmul.mubr.f32.gmra.mrb[0].mxu0 %v1182
      %v1250 = vpop.f32.mrb[0].mxu0
      %v1251 = vadd.f32 %v1178, %v1250
      %v1252 = vpop.f32.mrb[0].mxu0
      %1253 = vdwg.mxu0
      %s1254 = scalar_lea.vmem %s324, %s465
      %v1255 = vld [vmem:[%s1254] sm:$0xff]
      %v1256 = vadd.f32 %v1251, %v1255
      %1257 = vst.msk [vmem:[%s334] sm:$0xff] %vm1180, %v1256
      %p1258 = scmp.lt.s32.totalorder %s23, 1
      %s1259 = scalar_select %p1258, %s23, 1
      %p1260 = scmp.lt.s32.totalorder %s24, 0
      %s1261 = scalar_select %p1260, %s24, 0
      %s1262 = sadd.s32 %s1261, %s1259
      %s1263 = smul.addr %s1262, 8
      %s1264 = scalar_lea.vmem %s8, %s1263
      // Predicated region
      $region57: #{encoder_layer_forward.2} parent=51 // pred_check
        %p1265 = pneg %p229
      $region58: #{encoder_layer_forward.2} parent=51 // pred_check_branch
        %1267 = sbr.rel (%p1265) target = $region60
      $region59: #{encoder_layer_forward.2} parent=51 // pred_region
        _
      $region60: #{encoder_layer_forward.2} parent=51 // pred_fallthru
        _
    $region52: #{encoder_layer_forward.2} parent=5 // pred_fallthru
      _
    %p1268 = scmp.le.s32.totalorder 2, %s14
    // Predicated region
    $region61: #{encoder_layer_forward.2} parent=5 // pred_check
      %p1269 = pneg %p1268
    $region62: #{encoder_layer_forward.2} parent=5 // pred_check_branch
      %1271 = sbr.rel (%p1269) target = $region64
    $region63: #{encoder_layer_forward.2} parent=5 // pred_region
      %s1272 = ssub.s32 %s14, 2
      // Predicated region
      $region65: #{encoder_layer_forward.2} parent=63 // pred_check
        %p1273 = pneg %p235
      $region66: #{encoder_layer_forward.2} parent=63 // pred_check_branch
        %1275 = sbr.rel (%p1273) target = $region68
      $region67: #{encoder_layer_forward.2} parent=63 // pred_region
        %p1276 = scmp.lt.s32.totalorder %s25, 1
        %s1277 = scalar_select %p1276, %s25, 1
        %p1278 = scmp.lt.s32.totalorder %s26, 0
        %s1279 = scalar_select %p1278, %s26, 0
        %s1280 = sadd.s32 %s1279, %s1277
        %s1281 = smul.addr %s1280, 8
        %s1282 = scalar_lea.vmem %s8, %s1281
      $region68: #{encoder_layer_forward.2} parent=63 // pred_fallthru
        _
    $region64: #{encoder_layer_forward.2} parent=5 // pred_fallthru
      _
  $region6: #{encoder_layer_forward.2} parent=0 // loop_footer
    %s18 = sadd.s32 1, %s14
  $region7: #{encoder_layer_forward.2} parent=0 // loop_footer_branch
    %13 = sbr.rel target = $region3
  $region8: #{encoder_layer_forward.2} parent=0 // loop_exit
    _

</llo_original>
